<compile_context>
chip_gen: v7x
topology: tpu7x:2x2x1
jax: 0.10.0
libtpu: 0.0.40
codegen_flags: <defaults>
</compile_context>

<pallas_src>
import functools
import math

import jax
import jax.numpy as jnp
from jax.experimental import pallas as pl
from jax.experimental.pallas import tpu as pltpu

CP = 128       # padded channel width (max hidden = 128) -> lane-dense everywhere
SUBLANE = 8


def _round_up(v, m):
    return (v + m - 1) // m * m


def _vmem_spec():
    return pl.BlockSpec(memory_space=pltpu.MemorySpace.VMEM)


# ---------------------------------------------------------------------------
# Fused forward kernel: conv stack + mean-pool + MLP, single grid point.
# All layer loops are unrolled at trace time; activations never leave the chip.
# ---------------------------------------------------------------------------
def fused_gnn_kernel(a_ref, x_ref, p_ref, wconv_ref, bconv_ref, wmlp_ref, bmlp_ref,
                     o_ref, *, n_conv, n_mlp):
    a = a_ref[...]                                   # (Np, Np) bf16, loaded once
    h = x_ref[...]                                   # (Np, CP) f32

    # --- GraphConv + ReLU stack ---
    for i in range(n_conv):
        w = wconv_ref[i]                             # (2*CP, CP) bf16 = [[W_rel],[W_root]]
        b = bconv_ref[i]                             # (1, CP)   f32
        h_bf = h.astype(jnp.bfloat16)
        # aggregated neighbor features: (Np, Np) @ (Np, CP) -> f32 accumulate
        agg = jnp.dot(a, h_bf, preferred_element_type=jnp.float32)
        # merged matmul: [agg | x] @ [[W_rel],[W_root]]  (K = 2*CP)
        cat = jnp.concatenate([agg.astype(jnp.bfloat16), h_bf], axis=-1)   # (Np, 2*CP)
        h = jnp.dot(cat, w, preferred_element_type=jnp.float32) + b
        h = jnp.maximum(h, 0.0)                      # ReLU (zero-padded cols stay 0)

    # --- global mean pool: (Gp, Np) @ (Np, CP); P rows already / node count ---
    g = jnp.dot(p_ref[...], h, preferred_element_type=jnp.float32)         # (Gp, CP)

    # --- MLP head (ReLU on all but last layer) ---
    for i in range(n_mlp):
        w = wmlp_ref[i]                              # (CP, CP) bf16
        b = bmlp_ref[i]                              # (1, CP)  f32
        g = jnp.dot(g.astype(jnp.bfloat16), w, preferred_element_type=jnp.float32) + b
        if i < n_mlp - 1:
            g = jnp.maximum(g, 0.0)

    o_ref[...] = g                                   # (Gp, CP) lane-dense f32


def fused_gnn(a, x_pad, p_pad, wconv, bconv, wmlp, bmlp):
    n_conv = wconv.shape[0]
    n_mlp = wmlp.shape[0]
    g_pad = p_pad.shape[0]
    operands = (a, x_pad, p_pad, wconv, bconv, wmlp, bmlp)
    total_bytes = sum(int(v.size) * v.dtype.itemsize for v in operands) + g_pad * CP * 4
    # Size the scoped-VMEM limit to the real footprint (with headroom), capped at
    # 64 MiB so it never exceeds v7x physical VMEM.
    vmem_limit = int(min(64 << 20, max(16 << 20, 2 * total_bytes + (2 << 20))))
    return pl.pallas_call(
        functools.partial(fused_gnn_kernel, n_conv=n_conv, n_mlp=n_mlp),
        out_shape=jax.ShapeDtypeStruct((g_pad, CP), jnp.float32),
        in_specs=[_vmem_spec()] * len(operands),
        out_specs=_vmem_spec(),
        compiler_params=pltpu.CompilerParams(vmem_limit_bytes=vmem_limit),
    )(*operands)


# ---------------------------------------------------------------------------
# Parameter init (deterministic, synthetic) — mirrors GNN_flexible.__init__.
# Weights are packed/padded once: conv layer i -> rows [0,Cin) = W_rel,
# rows [CP, CP+Cin) = W_root, everything else zero; biases zero-padded.
# ---------------------------------------------------------------------------
def init_params(key, num_node_features=5, hidden_gcn=(32, 64, 128, 64, 32),
                hidden_mlp=(32, 16), num_classes=1):
    n_conv = len(hidden_gcn)
    wconv = jnp.zeros((n_conv, 2 * CP, CP), jnp.float32)
    bconv = jnp.zeros((n_conv, 1, CP), jnp.float32)
    in_c = num_node_features
    for i, out_c in enumerate(hidden_gcn):
        key, k1, k2, k3 = jax.random.split(key, 4)
        scale = 1.0 / math.sqrt(in_c)
        w_rel = jax.random.uniform(k1, (in_c, out_c), jnp.float32, -scale, scale)
        w_root = jax.random.uniform(k2, (in_c, out_c), jnp.float32, -scale, scale)
        b_rel = jax.random.uniform(k3, (out_c,), jnp.float32, -scale, scale)
        wconv = wconv.at[i, :in_c, :out_c].set(w_rel)
        wconv = wconv.at[i, CP:CP + in_c, :out_c].set(w_root)
        bconv = bconv.at[i, 0, :out_c].set(b_rel)
        in_c = out_c

    dims = list(hidden_mlp) + [num_classes]
    n_mlp = len(dims)
    wmlp = jnp.zeros((n_mlp, CP, CP), jnp.float32)
    bmlp = jnp.zeros((n_mlp, 1, CP), jnp.float32)
    prev = hidden_gcn[-1]
    for i, d in enumerate(dims):
        key, k1, k2 = jax.random.split(key, 3)
        scale = 1.0 / math.sqrt(prev)
        w = jax.random.uniform(k1, (prev, d), jnp.float32, -scale, scale)
        b = jax.random.uniform(k2, (d,), jnp.float32, -scale, scale)
        wmlp = wmlp.at[i, :prev, :d].set(w)
        bmlp = bmlp.at[i, 0, :d].set(b)
        prev = d

    return {
        "wconv": wconv.astype(jnp.bfloat16),   # bf16 for the MXU
        "bconv": bconv,                        # f32 epilogue
        "wmlp": wmlp.astype(jnp.bfloat16),
        "bmlp": bmlp,
    }


# ---------------------------------------------------------------------------
# Forward pass: plain-JAX glue builds dense adjacency + pooling matrix (padded,
# data-dependent scatter); everything else runs inside the single fused kernel.
# ---------------------------------------------------------------------------
@functools.partial(jax.jit, static_argnames=("num_graphs", "num_classes"))
def gnn_forward(params, x, edge_index, edge_attr, batch, *, num_graphs, num_classes=1):
    n, c0 = x.shape
    n_pad = _round_up(n, SUBLANE)
    g_pad = _round_up(num_graphs, SUBLANE)

    # dense weighted adjacency: A[dst, src] = sum of edge weights, cast to bf16
    a = jnp.zeros((n_pad, n_pad), jnp.float32)
    a = a.at[edge_index[1], edge_index[0]].add(edge_attr)
    a = a.astype(jnp.bfloat16)

    # node features padded to (n_pad, CP)
    x_pad = jnp.zeros((n_pad, CP), jnp.float32).at[:n, :c0].set(x)

    # global_mean_pool as a matmul: P[g, i] = (batch[i] == g) / count[g]
    onehot = (batch[None, :] == jnp.arange(num_graphs)[:, None]).astype(jnp.float32)
    counts = jnp.maximum(onehot.sum(axis=1, keepdims=True), 1.0)
    p_pad = jnp.zeros((g_pad, n_pad), jnp.float32).at[:num_graphs, :n].set(onehot / counts)

    out = fused_gnn(a, x_pad, p_pad, params["wconv"], params["bconv"],
                    params["wmlp"], params["bmlp"])
    return out[:num_graphs, :num_classes]


if __name__ == "__main__":
    key = jax.random.PRNGKey(0)

    num_nodes = 16
    num_node_features = 5
    num_edges = 40
    num_graphs = 2

    key, kx, ksrc, kdst, kw = jax.random.split(key, 5)
    x = jax.random.normal(kx, (num_nodes, num_node_features), jnp.float32)
    src = jax.random.randint(ksrc, (num_edges,), 0, num_nodes, jnp.int32)
    dst = jax.random.randint(kdst, (num_edges,), 0, num_nodes, jnp.int32)
    edge_index = jnp.stack([src, dst], axis=0)                     # (2, E)
    edge_attr = jax.random.uniform(kw, (num_edges,), jnp.float32)  # (E,) scalar edge weights
    batch = jnp.concatenate(
        [jnp.zeros(num_nodes // 2, jnp.int32), jnp.ones(num_nodes - num_nodes // 2, jnp.int32)]
    )

    params = init_params(key, num_node_features=num_node_features)

    out = gnn_forward(params, x, edge_index, edge_attr, batch, num_graphs=num_graphs)
    out = jax.block_until_ready(out)
    assert out.shape == (num_graphs, 1), out.shape
    print("KERNEL_OK")
</pallas_src>

<mosaic_0001>
module attributes {stable_mosaic.version = 11 : i64} {
  func.func @fused_gnn_kernel(%arg0: memref<16x16xbf16, #tpu.memory_space<vmem>>, %arg1: memref<16x128xf32, #tpu.memory_space<vmem>>, %arg2: memref<8x16xf32, #tpu.memory_space<vmem>>, %arg3: memref<5x256x128xbf16, #tpu.memory_space<vmem>>, %arg4: memref<5x1x128xf32, #tpu.memory_space<vmem>>, %arg5: memref<3x128x128xbf16, #tpu.memory_space<vmem>>, %arg6: memref<3x1x128xf32, #tpu.memory_space<vmem>>, %arg7: memref<8x128xf32, #tpu.memory_space<vmem>>) attributes {dimension_semantics = [], scalar_prefetch = 0 : i64, scratch_operands = 0 : i64, tpu.core_type = #tpu.core_type<tc>} {
    %c0 = arith.constant 0 : index
    %c0_0 = arith.constant 0 : index
    %0 = vector.load %arg0[%c0, %c0_0] : memref<16x16xbf16, #tpu.memory_space<vmem>>, vector<16x16xbf16>
    %c0_1 = arith.constant 0 : index
    %c0_2 = arith.constant 0 : index
    %1 = vector.load %arg1[%c0_1, %c0_2] : memref<16x128xf32, #tpu.memory_space<vmem>>, vector<16x128xf32>
    %c0_3 = arith.constant 0 : index
    %c0_4 = arith.constant 0 : index
    %c0_5 = arith.constant 0 : index
    %2 = vector.load %arg3[%c0_3, %c0_4, %c0_5] : memref<5x256x128xbf16, #tpu.memory_space<vmem>>, vector<1x256x128xbf16>
    %3 = vector.shape_cast %2 : vector<1x256x128xbf16> to vector<256x128xbf16>
    %c0_6 = arith.constant 0 : index
    %c0_7 = arith.constant 0 : index
    %c0_8 = arith.constant 0 : index
    %4 = vector.load %arg4[%c0_6, %c0_7, %c0_8] : memref<5x1x128xf32, #tpu.memory_space<vmem>>, vector<1x1x128xf32>
    %5 = vector.shape_cast %4 : vector<1x1x128xf32> to vector<1x128xf32>
    %6 = arith.truncf %1 : vector<16x128xf32> to vector<16x128xbf16>
    %cst = arith.constant dense<0.000000e+00> : vector<16x128xf32>
    %7 = tpu.matmul %0, %6, %cst {dimension_numbers = #tpu.dot_dimension_numbers<[1], [0], [0], [1], [0, 0, 1, 1], [], []>} : vector<16x16xbf16>, vector<16x128xbf16>, vector<16x128xf32> -> vector<16x128xf32>
    %8 = arith.truncf %7 : vector<16x128xf32> to vector<16x128xbf16>
    %9 = tpu.concatenate %8, %6 in 1 : vector<16x128xbf16>, vector<16x128xbf16> -> vector<16x256xbf16>
    %cst_9 = arith.constant dense<0.000000e+00> : vector<16x128xf32>
    %10 = tpu.matmul %9, %3, %cst_9 {dimension_numbers = #tpu.dot_dimension_numbers<[1], [0], [0], [1], [0, 0, 1, 1], [], []>} : vector<16x256xbf16>, vector<256x128xbf16>, vector<16x128xf32> -> vector<16x128xf32>
    %11 = vector.broadcast %5 : vector<1x128xf32> to vector<16x128xf32>
    %12 = arith.addf %10, %11 : vector<16x128xf32>
    %cst_10 = arith.constant 0.000000e+00 : f32
    %13 = vector.broadcast %cst_10 : f32 to vector<16x128xf32>
    %14 = arith.maximumf %12, %13 : vector<16x128xf32>
    %c1 = arith.constant 1 : index
    %c0_11 = arith.constant 0 : index
    %c0_12 = arith.constant 0 : index
    %15 = vector.load %arg3[%c1, %c0_11, %c0_12] : memref<5x256x128xbf16, #tpu.memory_space<vmem>>, vector<1x256x128xbf16>
    %16 = vector.shape_cast %15 : vector<1x256x128xbf16> to vector<256x128xbf16>
    %c1_13 = arith.constant 1 : index
    %c0_14 = arith.constant 0 : index
    %c0_15 = arith.constant 0 : index
    %17 = vector.load %arg4[%c1_13, %c0_14, %c0_15] : memref<5x1x128xf32, #tpu.memory_space<vmem>>, vector<1x1x128xf32>
    %18 = vector.shape_cast %17 : vector<1x1x128xf32> to vector<1x128xf32>
    %19 = arith.truncf %14 : vector<16x128xf32> to vector<16x128xbf16>
    %cst_16 = arith.constant dense<0.000000e+00> : vector<16x128xf32>
    %20 = tpu.matmul %0, %19, %cst_16 {dimension_numbers = #tpu.dot_dimension_numbers<[1], [0], [0], [1], [0, 0, 1, 1], [], []>} : vector<16x16xbf16>, vector<16x128xbf16>, vector<16x128xf32> -> vector<16x128xf32>
    %21 = arith.truncf %20 : vector<16x128xf32> to vector<16x128xbf16>
    %22 = tpu.concatenate %21, %19 in 1 : vector<16x128xbf16>, vector<16x128xbf16> -> vector<16x256xbf16>
    %cst_17 = arith.constant dense<0.000000e+00> : vector<16x128xf32>
    %23 = tpu.matmul %22, %16, %cst_17 {dimension_numbers = #tpu.dot_dimension_numbers<[1], [0], [0], [1], [0, 0, 1, 1], [], []>} : vector<16x256xbf16>, vector<256x128xbf16>, vector<16x128xf32> -> vector<16x128xf32>
    %24 = vector.broadcast %18 : vector<1x128xf32> to vector<16x128xf32>
    %25 = arith.addf %23, %24 : vector<16x128xf32>
    %cst_18 = arith.constant 0.000000e+00 : f32
    %26 = vector.broadcast %cst_18 : f32 to vector<16x128xf32>
    %27 = arith.maximumf %25, %26 : vector<16x128xf32>
    %c2 = arith.constant 2 : index
    %c0_19 = arith.constant 0 : index
    %c0_20 = arith.constant 0 : index
    %28 = vector.load %arg3[%c2, %c0_19, %c0_20] : memref<5x256x128xbf16, #tpu.memory_space<vmem>>, vector<1x256x128xbf16>
    %29 = vector.shape_cast %28 : vector<1x256x128xbf16> to vector<256x128xbf16>
    %c2_21 = arith.constant 2 : index
    %c0_22 = arith.constant 0 : index
    %c0_23 = arith.constant 0 : index
    %30 = vector.load %arg4[%c2_21, %c0_22, %c0_23] : memref<5x1x128xf32, #tpu.memory_space<vmem>>, vector<1x1x128xf32>
    %31 = vector.shape_cast %30 : vector<1x1x128xf32> to vector<1x128xf32>
    %32 = arith.truncf %27 : vector<16x128xf32> to vector<16x128xbf16>
    %cst_24 = arith.constant dense<0.000000e+00> : vector<16x128xf32>
    %33 = tpu.matmul %0, %32, %cst_24 {dimension_numbers = #tpu.dot_dimension_numbers<[1], [0], [0], [1], [0, 0, 1, 1], [], []>} : vector<16x16xbf16>, vector<16x128xbf16>, vector<16x128xf32> -> vector<16x128xf32>
    %34 = arith.truncf %33 : vector<16x128xf32> to vector<16x128xbf16>
    %35 = tpu.concatenate %34, %32 in 1 : vector<16x128xbf16>, vector<16x128xbf16> -> vector<16x256xbf16>
    %cst_25 = arith.constant dense<0.000000e+00> : vector<16x128xf32>
    %36 = tpu.matmul %35, %29, %cst_25 {dimension_numbers = #tpu.dot_dimension_numbers<[1], [0], [0], [1], [0, 0, 1, 1], [], []>} : vector<16x256xbf16>, vector<256x128xbf16>, vector<16x128xf32> -> vector<16x128xf32>
    %37 = vector.broadcast %31 : vector<1x128xf32> to vector<16x128xf32>
    %38 = arith.addf %36, %37 : vector<16x128xf32>
    %cst_26 = arith.constant 0.000000e+00 : f32
    %39 = vector.broadcast %cst_26 : f32 to vector<16x128xf32>
    %40 = arith.maximumf %38, %39 : vector<16x128xf32>
    %c3 = arith.constant 3 : index
    %c0_27 = arith.constant 0 : index
    %c0_28 = arith.constant 0 : index
    %41 = vector.load %arg3[%c3, %c0_27, %c0_28] : memref<5x256x128xbf16, #tpu.memory_space<vmem>>, vector<1x256x128xbf16>
    %42 = vector.shape_cast %41 : vector<1x256x128xbf16> to vector<256x128xbf16>
    %c3_29 = arith.constant 3 : index
    %c0_30 = arith.constant 0 : index
    %c0_31 = arith.constant 0 : index
    %43 = vector.load %arg4[%c3_29, %c0_30, %c0_31] : memref<5x1x128xf32, #tpu.memory_space<vmem>>, vector<1x1x128xf32>
    %44 = vector.shape_cast %43 : vector<1x1x128xf32> to vector<1x128xf32>
    %45 = arith.truncf %40 : vector<16x128xf32> to vector<16x128xbf16>
    %cst_32 = arith.constant dense<0.000000e+00> : vector<16x128xf32>
    %46 = tpu.matmul %0, %45, %cst_32 {dimension_numbers = #tpu.dot_dimension_numbers<[1], [0], [0], [1], [0, 0, 1, 1], [], []>} : vector<16x16xbf16>, vector<16x128xbf16>, vector<16x128xf32> -> vector<16x128xf32>
    %47 = arith.truncf %46 : vector<16x128xf32> to vector<16x128xbf16>
    %48 = tpu.concatenate %47, %45 in 1 : vector<16x128xbf16>, vector<16x128xbf16> -> vector<16x256xbf16>
    %cst_33 = arith.constant dense<0.000000e+00> : vector<16x128xf32>
    %49 = tpu.matmul %48, %42, %cst_33 {dimension_numbers = #tpu.dot_dimension_numbers<[1], [0], [0], [1], [0, 0, 1, 1], [], []>} : vector<16x256xbf16>, vector<256x128xbf16>, vector<16x128xf32> -> vector<16x128xf32>
    %50 = vector.broadcast %44 : vector<1x128xf32> to vector<16x128xf32>
    %51 = arith.addf %49, %50 : vector<16x128xf32>
    %cst_34 = arith.constant 0.000000e+00 : f32
    %52 = vector.broadcast %cst_34 : f32 to vector<16x128xf32>
    %53 = arith.maximumf %51, %52 : vector<16x128xf32>
    %c4 = arith.constant 4 : index
    %c0_35 = arith.constant 0 : index
    %c0_36 = arith.constant 0 : index
    %54 = vector.load %arg3[%c4, %c0_35, %c0_36] : memref<5x256x128xbf16, #tpu.memory_space<vmem>>, vector<1x256x128xbf16>
    %55 = vector.shape_cast %54 : vector<1x256x128xbf16> to vector<256x128xbf16>
    %c4_37 = arith.constant 4 : index
    %c0_38 = arith.constant 0 : index
    %c0_39 = arith.constant 0 : index
    %56 = vector.load %arg4[%c4_37, %c0_38, %c0_39] : memref<5x1x128xf32, #tpu.memory_space<vmem>>, vector<1x1x128xf32>
    %57 = vector.shape_cast %56 : vector<1x1x128xf32> to vector<1x128xf32>
    %58 = arith.truncf %53 : vector<16x128xf32> to vector<16x128xbf16>
    %cst_40 = arith.constant dense<0.000000e+00> : vector<16x128xf32>
    %59 = tpu.matmul %0, %58, %cst_40 {dimension_numbers = #tpu.dot_dimension_numbers<[1], [0], [0], [1], [0, 0, 1, 1], [], []>} : vector<16x16xbf16>, vector<16x128xbf16>, vector<16x128xf32> -> vector<16x128xf32>
    %60 = arith.truncf %59 : vector<16x128xf32> to vector<16x128xbf16>
    %61 = tpu.concatenate %60, %58 in 1 : vector<16x128xbf16>, vector<16x128xbf16> -> vector<16x256xbf16>
    %cst_41 = arith.constant dense<0.000000e+00> : vector<16x128xf32>
    %62 = tpu.matmul %61, %55, %cst_41 {dimension_numbers = #tpu.dot_dimension_numbers<[1], [0], [0], [1], [0, 0, 1, 1], [], []>} : vector<16x256xbf16>, vector<256x128xbf16>, vector<16x128xf32> -> vector<16x128xf32>
    %63 = vector.broadcast %57 : vector<1x128xf32> to vector<16x128xf32>
    %64 = arith.addf %62, %63 : vector<16x128xf32>
    %cst_42 = arith.constant 0.000000e+00 : f32
    %65 = vector.broadcast %cst_42 : f32 to vector<16x128xf32>
    %66 = arith.maximumf %64, %65 : vector<16x128xf32>
    %c0_43 = arith.constant 0 : index
    %c0_44 = arith.constant 0 : index
    %67 = vector.load %arg2[%c0_43, %c0_44] : memref<8x16xf32, #tpu.memory_space<vmem>>, vector<8x16xf32>
    %cst_45 = arith.constant dense<0.000000e+00> : vector<8x128xf32>
    %68 = tpu.matmul %67, %66, %cst_45 {dimension_numbers = #tpu.dot_dimension_numbers<[1], [0], [0], [1], [0, 0, 1, 1], [], []>} : vector<8x16xf32>, vector<16x128xf32>, vector<8x128xf32> -> vector<8x128xf32>
    %c0_46 = arith.constant 0 : index
    %c0_47 = arith.constant 0 : index
    %c0_48 = arith.constant 0 : index
    %69 = vector.load %arg5[%c0_46, %c0_47, %c0_48] : memref<3x128x128xbf16, #tpu.memory_space<vmem>>, vector<1x128x128xbf16>
    %70 = vector.shape_cast %69 : vector<1x128x128xbf16> to vector<128x128xbf16>
    %c0_49 = arith.constant 0 : index
    %c0_50 = arith.constant 0 : index
    %c0_51 = arith.constant 0 : index
    %71 = vector.load %arg6[%c0_49, %c0_50, %c0_51] : memref<3x1x128xf32, #tpu.memory_space<vmem>>, vector<1x1x128xf32>
    %72 = vector.shape_cast %71 : vector<1x1x128xf32> to vector<1x128xf32>
    %73 = arith.truncf %68 : vector<8x128xf32> to vector<8x128xbf16>
    %cst_52 = arith.constant dense<0.000000e+00> : vector<8x128xf32>
    %74 = tpu.matmul %73, %70, %cst_52 {dimension_numbers = #tpu.dot_dimension_numbers<[1], [0], [0], [1], [0, 0, 1, 1], [], []>} : vector<8x128xbf16>, vector<128x128xbf16>, vector<8x128xf32> -> vector<8x128xf32>
    %75 = vector.broadcast %72 : vector<1x128xf32> to vector<8x128xf32>
    %76 = arith.addf %74, %75 : vector<8x128xf32>
    %cst_53 = arith.constant 0.000000e+00 : f32
    %77 = vector.broadcast %cst_53 : f32 to vector<8x128xf32>
    %78 = arith.maximumf %76, %77 : vector<8x128xf32>
    %c1_54 = arith.constant 1 : index
    %c0_55 = arith.constant 0 : index
    %c0_56 = arith.constant 0 : index
    %79 = vector.load %arg5[%c1_54, %c0_55, %c0_56] : memref<3x128x128xbf16, #tpu.memory_space<vmem>>, vector<1x128x128xbf16>
    %80 = vector.shape_cast %79 : vector<1x128x128xbf16> to vector<128x128xbf16>
    %c1_57 = arith.constant 1 : index
    %c0_58 = arith.constant 0 : index
    %c0_59 = arith.constant 0 : index
    %81 = vector.load %arg6[%c1_57, %c0_58, %c0_59] : memref<3x1x128xf32, #tpu.memory_space<vmem>>, vector<1x1x128xf32>
    %82 = vector.shape_cast %81 : vector<1x1x128xf32> to vector<1x128xf32>
    %83 = arith.truncf %78 : vector<8x128xf32> to vector<8x128xbf16>
    %cst_60 = arith.constant dense<0.000000e+00> : vector<8x128xf32>
    %84 = tpu.matmul %83, %80, %cst_60 {dimension_numbers = #tpu.dot_dimension_numbers<[1], [0], [0], [1], [0, 0, 1, 1], [], []>} : vector<8x128xbf16>, vector<128x128xbf16>, vector<8x128xf32> -> vector<8x128xf32>
    %85 = vector.broadcast %82 : vector<1x128xf32> to vector<8x128xf32>
    %86 = arith.addf %84, %85 : vector<8x128xf32>
    %cst_61 = arith.constant 0.000000e+00 : f32
    %87 = vector.broadcast %cst_61 : f32 to vector<8x128xf32>
    %88 = arith.maximumf %86, %87 : vector<8x128xf32>
    %c2_62 = arith.constant 2 : index
    %c0_63 = arith.constant 0 : index
    %c0_64 = arith.constant 0 : index
    %89 = vector.load %arg5[%c2_62, %c0_63, %c0_64] : memref<3x128x128xbf16, #tpu.memory_space<vmem>>, vector<1x128x128xbf16>
    %90 = vector.shape_cast %89 : vector<1x128x128xbf16> to vector<128x128xbf16>
    %c2_65 = arith.constant 2 : index
    %c0_66 = arith.constant 0 : index
    %c0_67 = arith.constant 0 : index
    %91 = vector.load %arg6[%c2_65, %c0_66, %c0_67] : memref<3x1x128xf32, #tpu.memory_space<vmem>>, vector<1x1x128xf32>
    %92 = vector.shape_cast %91 : vector<1x1x128xf32> to vector<1x128xf32>
    %93 = arith.truncf %88 : vector<8x128xf32> to vector<8x128xbf16>
    %cst_68 = arith.constant dense<0.000000e+00> : vector<8x128xf32>
    %94 = tpu.matmul %93, %90, %cst_68 {dimension_numbers = #tpu.dot_dimension_numbers<[1], [0], [0], [1], [0, 0, 1, 1], [], []>} : vector<8x128xbf16>, vector<128x128xbf16>, vector<8x128xf32> -> vector<8x128xf32>
    %95 = vector.broadcast %92 : vector<1x128xf32> to vector<8x128xf32>
    %96 = arith.addf %94, %95 : vector<8x128xf32>
    %c0_69 = arith.constant 0 : index
    %c0_70 = arith.constant 0 : index
    %97 = vector.load %arg7[%c0_69, %c0_70] : memref<8x128xf32, #tpu.memory_space<vmem>>, vector<8x128xf32>
    tpu.vector_store %arg7[%c0_69, %c0_70], %96 {strides = array<i32>} : memref<8x128xf32, #tpu.memory_space<vmem>>, vector<8x128xf32>,
    return
  }
}

</mosaic_0001>

<llo_original>
// kernel: gnn_forward.1
$region0: #{gnn_forward.1}
  #allocation0 [shape = 'u32[]', space=smem, size = 0x4, offset = 0x4, fixed_abs, tag = 'smem constant byte address 0x4 - core index']
  #allocation1 [shape = 'u32[144,128]{1,0:T(1,128)}', space=vmem, size = 0x12000, scoped, tag = 'internal scratch']
  %s0 = inlined_call_operand.vmem [shape: bf16[16,16], index: 0, kind: input, shape index: {}]
  %s1 = inlined_call_operand.vmem [shape: f32[16,128], index: 1, kind: input, shape index: {}]
  %s2 = inlined_call_operand.vmem [shape: f32[8,16], index: 2, kind: input, shape index: {}]
  %s3 = inlined_call_operand.vmem [shape: bf16[5,256,128], index: 3, kind: input, shape index: {}]
  %s4 = inlined_call_operand.vmem [shape: f32[5,1,128], index: 4, kind: input, shape index: {}]
  %s5 = inlined_call_operand.vmem [shape: bf16[3,128,128], index: 5, kind: input, shape index: {}]
  %s6 = inlined_call_operand.vmem [shape: f32[3,1,128], index: 6, kind: input, shape index: {}]
  %s7 = inlined_call_operand.vmem [shape: f32[8,128], index: 7, kind: output, shape index: {}]
  %s8 = sld [smem:[#allocation0]]
  $region38: #{gnn_forward.1} parent=0
    _
  %s10 = ssub.s32 1, %s8
  %s11 = scalar_select 0, %s10, %s8
  // Predicated region
  $region2: #{gnn_forward.1} parent=0 // pred_check
    _
  $region3: #{gnn_forward.1} parent=0 // pred_check_branch
    %13 = sbr.rel (0) target = $region5
  $region4: #{gnn_forward.1} parent=0 // pred_region
    _
  $region5: #{gnn_forward.1} parent=0 // pred_fallthru
    _
  // Predicated region
  $region6: #{gnn_forward.1} parent=0 // pred_check
    _
  $region7: #{gnn_forward.1} parent=0 // pred_check_branch
    %15 = sbr.rel (0) target = $region9
  $region8: #{gnn_forward.1} parent=0 // pred_region
    _
  $region9: #{gnn_forward.1} parent=0 // pred_fallthru
    _
  // Predicated region
  $region10: #{gnn_forward.1} parent=0 // pred_check
    _
  $region11: #{gnn_forward.1} parent=0 // pred_check_branch
    %17 = sbr.rel (0) target = $region13
  $region12: #{gnn_forward.1} parent=0 // pred_region
    _
  $region13: #{gnn_forward.1} parent=0 // pred_fallthru
    _
  // Predicated region
  $region14: #{gnn_forward.1} parent=0 // pred_check
    _
  $region15: #{gnn_forward.1} parent=0 // pred_check_branch
    %19 = sbr.rel (0) target = $region17
  $region16: #{gnn_forward.1} parent=0 // pred_region
    _
  $region17: #{gnn_forward.1} parent=0 // pred_fallthru
    _
  // Predicated region
  $region18: #{gnn_forward.1} parent=0 // pred_check
    _
  $region19: #{gnn_forward.1} parent=0 // pred_check_branch
    %21 = sbr.rel (0) target = $region21
  $region20: #{gnn_forward.1} parent=0 // pred_region
    _
  $region21: #{gnn_forward.1} parent=0 // pred_fallthru
    _
  // Predicated region
  $region22: #{gnn_forward.1} parent=0 // pred_check
    _
  $region23: #{gnn_forward.1} parent=0 // pred_check_branch
    %23 = sbr.rel (0) target = $region25
  $region24: #{gnn_forward.1} parent=0 // pred_region
    _
  $region25: #{gnn_forward.1} parent=0 // pred_fallthru
    _
  // Predicated region
  $region26: #{gnn_forward.1} parent=0 // pred_check
    _
  $region27: #{gnn_forward.1} parent=0 // pred_check_branch
    %25 = sbr.rel (0) target = $region29
  $region28: #{gnn_forward.1} parent=0 // pred_region
    _
  $region29: #{gnn_forward.1} parent=0 // pred_fallthru
    _
  %v27 = vld [vmem:[%s0] sm:$0xf]
  %v28 = vld [vmem:[%s0 + $0x4] sm:$0xf]
  %v29 = vld [vmem:[%s1] sm:$0xff]
  %v30 = vld [vmem:[%s1 + $0x8] sm:$0xff]
  %v31 = vld [vmem:[%s3] sm:$0xf]
  %v32 = vld [vmem:[%s3 + $0x4] sm:$0xf]
  %v33 = vld [vmem:[%s3 + $0x8] sm:$0xf]
  %v34 = vld [vmem:[%s3 + $0xc] sm:$0xf]
  %v35 = vld [vmem:[%s3 + $0x10] sm:$0xf]
  %v36 = vld [vmem:[%s3 + $0x14] sm:$0xf]
  %v37 = vld [vmem:[%s3 + $0x18] sm:$0xf]
  %v38 = vld [vmem:[%s3 + $0x1c] sm:$0xf]
  %v39 = vld [vmem:[%s3 + $0x20] sm:$0xf]
  %v40 = vld [vmem:[%s3 + $0x24] sm:$0xf]
  %v41 = vld [vmem:[%s3 + $0x28] sm:$0xf]
  %v42 = vld [vmem:[%s3 + $0x2c] sm:$0xf]
  %v43 = vld [vmem:[%s3 + $0x30] sm:$0xf]
  %v44 = vld [vmem:[%s3 + $0x34] sm:$0xf]
  %v45 = vld [vmem:[%s3 + $0x38] sm:$0xf]
  %v46 = vld [vmem:[%s3 + $0x3c] sm:$0xf]
  %v47 = vld [vmem:[%s3 + $0x40] sm:$0xf]
  %v48 = vld [vmem:[%s3 + $0x44] sm:$0xf]
  %v49 = vld [vmem:[%s3 + $0x48] sm:$0xf]
  %v50 = vld [vmem:[%s3 + $0x4c] sm:$0xf]
  %v51 = vld [vmem:[%s3 + $0x50] sm:$0xf]
  %v52 = vld [vmem:[%s3 + $0x54] sm:$0xf]
  %v53 = vld [vmem:[%s3 + $0x58] sm:$0xf]
  %v54 = vld [vmem:[%s3 + $0x5c] sm:$0xf]
  %v55 = vld [vmem:[%s3 + $0x60] sm:$0xf]
  %v56 = vld [vmem:[%s3 + $0x64] sm:$0xf]
  %v57 = vld [vmem:[%s3 + $0x68] sm:$0xf]
  %v58 = vld [vmem:[%s3 + $0x6c] sm:$0xf]
  %v59 = vld [vmem:[%s3 + $0x70] sm:$0xf]
  %v60 = vld [vmem:[%s3 + $0x74] sm:$0xf]
  %v61 = vld [vmem:[%s3 + $0x78] sm:$0xf]
  %v62 = vld [vmem:[%s3 + $0x7c] sm:$0xf]
  %v63 = vld [vmem:[%s4] sm:$0x1]
  %v64 = vpack.c.bf16 %v30, %v29
  %v67 = vunpack.c.l.b16 %v27
  %v68 = vunpack.c.l.b16 %v28
  %v69 = vpack.c.b16 %v68, %v67
  %vm70 = vcmask 130048
  %v72 = vsel %vm70, %v69, 0
  %74 = vmatprep.subr.bf16.mxu0 0
  %75 = vmatpush1.bf16.msra.mxu0 %v64
  %76 = vmatprep.subr.bf16.mxu0 0
  %77 = vmatpush1.bf16.msra.mxu0 0
  %78 = vmatprep.subr.bf16.mxu0 0
  %79 = vmatpush1.bf16.msra.mxu0 0
  %80 = vmatprep.subr.bf16.mxu0 0
  %81 = vmatpush1.bf16.msra.mxu0 0
  %82 = vmatprep.subr.bf16.mxu0 0
  %83 = vmatpush1.bf16.msra.mxu0 0
  %84 = vmatprep.subr.bf16.mxu0 0
  %85 = vmatpush1.bf16.msra.mxu0 0
  %86 = vmatprep.subr.bf16.mxu0 0
  %87 = vmatpush1.bf16.msra.mxu0 0
  %88 = vmatprep.subr.bf16.mxu0 0
  %89 = vmatpush1.bf16.msra.mxu0 0
  %90 = vmatprep.subr.bf16.mxu0 0
  %91 = vmatpush1.bf16.msra.mxu0 0
  %92 = vmatprep.subr.bf16.mxu0 0
  %93 = vmatpush1.bf16.msra.mxu0 0
  %94 = vmatprep.subr.bf16.mxu0 0
  %95 = vmatpush1.bf16.msra.mxu0 0
  %96 = vmatprep.subr.bf16.mxu0 0
  %97 = vmatpush1.bf16.msra.mxu0 0
  %98 = vmatprep.subr.bf16.mxu0 0
  %99 = vmatpush1.bf16.msra.mxu0 0
  %100 = vmatprep.subr.bf16.mxu0 0
  %101 = vmatpush1.bf16.msra.mxu0 0
  %102 = vmatprep.subr.bf16.mxu0 0
  %103 = vmatpush1.bf16.msra.mxu0 0
  %104 = vmatprep.subr.bf16.mxu0 0
  %105 = vmatpush1.bf16.msra.mxu0 0
  %106 = vmatprep.mubr.bf16.mxu0 0
  %107 = vmatmul.mubr.bf16.gmra.mrb[0].mxu0 %v72
  %v108 = vpop.f32.mrb[0].mxu0
  %v109 = vadd.f32 0.0, %v108
  %v110 = vpop.f32.mrb[0].mxu0
  %v111 = vpop.f32.mrb[0].mxu0
  %v112 = vadd.f32 0.0, %v111
  %v113 = vpop.f32.mrb[0].mxu0
  %114 = vdwg.mxu0
  %v115 = vpack.c.bf16 %v112, %v109
  %v117 = vlaneseq
  %v118 = vshrl.u32 %v117, 7
  %v119 = vsub.s32 0, %v118
  %v120 = vrot.slane %v63, %v119
  %v154 = vunpack.c.l.b16 %v31
  %v155 = vunpack.c.l.b16 %v32
  %v156 = vunpack.c.l.b16 %v33
  %v157 = vunpack.c.l.b16 %v34
  %v158 = vunpack.c.l.b16 %v35
  %v159 = vunpack.c.l.b16 %v36
  %v160 = vunpack.c.l.b16 %v37
  %v161 = vunpack.c.l.b16 %v38
  %v162 = vunpack.c.l.b16 %v39
  %v163 = vunpack.c.l.b16 %v40
  %v164 = vunpack.c.l.b16 %v41
  %v165 = vunpack.c.l.b16 %v42
  %v166 = vunpack.c.l.b16 %v43
  %v167 = vunpack.c.l.b16 %v44
  %v168 = vunpack.c.l.b16 %v45
  %v169 = vunpack.c.l.b16 %v46
  %v170 = vunpack.c.l.b16 %v47
  %v171 = vunpack.c.l.b16 %v48
  %v172 = vunpack.c.l.b16 %v49
  %v173 = vunpack.c.l.b16 %v50
  %v174 = vunpack.c.l.b16 %v51
  %v175 = vunpack.c.l.b16 %v52
  %v176 = vunpack.c.l.b16 %v53
  %v177 = vunpack.c.l.b16 %v54
  %v178 = vunpack.c.l.b16 %v55
  %v179 = vunpack.c.l.b16 %v56
  %v180 = vunpack.c.l.b16 %v57
  %v181 = vunpack.c.l.b16 %v58
  %v182 = vunpack.c.l.b16 %v59
  %v183 = vunpack.c.l.b16 %v60
  %v184 = vunpack.c.l.b16 %v61
  %v185 = vunpack.c.l.b16 %v62
  %v186 = vpack.c.b16 %v155, %v154
  %v187 = vpack.c.b16 %v157, %v156
  %v188 = vpack.c.b16 %v159, %v158
  %v189 = vpack.c.b16 %v161, %v160
  %v190 = vpack.c.b16 %v163, %v162
  %v191 = vpack.c.b16 %v165, %v164
  %v192 = vpack.c.b16 %v167, %v166
  %v193 = vpack.c.b16 %v169, %v168
  %v194 = vpack.c.b16 %v171, %v170
  %v195 = vpack.c.b16 %v173, %v172
  %v196 = vpack.c.b16 %v175, %v174
  %v197 = vpack.c.b16 %v177, %v176
  %v198 = vpack.c.b16 %v179, %v178
  %v199 = vpack.c.b16 %v181, %v180
  %v200 = vpack.c.b16 %v183, %v182
  %v201 = vpack.c.b16 %v185, %v184
  %218 = vmatprep.subr.bf16.mxu0 0
  %219 = vmatpush1.bf16.msra.mxu0 %v186
  %220 = vmatprep.subr.bf16.mxu0 0
  %221 = vmatpush1.bf16.msra.mxu0 %v187
  %222 = vmatprep.subr.bf16.mxu0 0
  %223 = vmatpush1.bf16.msra.mxu0 %v188
  %224 = vmatprep.subr.bf16.mxu0 0
  %225 = vmatpush1.bf16.msra.mxu0 %v189
  %226 = vmatprep.subr.bf16.mxu0 0
  %227 = vmatpush1.bf16.msra.mxu0 %v190
  %228 = vmatprep.subr.bf16.mxu0 0
  %229 = vmatpush1.bf16.msra.mxu0 %v191
  %230 = vmatprep.subr.bf16.mxu0 0
  %231 = vmatpush1.bf16.msra.mxu0 %v192
  %232 = vmatprep.subr.bf16.mxu0 0
  %233 = vmatpush1.bf16.msra.mxu0 %v193
  %234 = vmatprep.subr.bf16.mxu0 0
  %235 = vmatpush1.bf16.msra.mxu0 %v194
  %236 = vmatprep.subr.bf16.mxu0 0
  %237 = vmatpush1.bf16.msra.mxu0 %v195
  %238 = vmatprep.subr.bf16.mxu0 0
  %239 = vmatpush1.bf16.msra.mxu0 %v196
  %240 = vmatprep.subr.bf16.mxu0 0
  %241 = vmatpush1.bf16.msra.mxu0 %v197
  %242 = vmatprep.subr.bf16.mxu0 0
  %243 = vmatpush1.bf16.msra.mxu0 %v198
  %244 = vmatprep.subr.bf16.mxu0 0
  %245 = vmatpush1.bf16.msra.mxu0 %v199
  %246 = vmatprep.subr.bf16.mxu0 0
  %247 = vmatpush1.bf16.msra.mxu0 %v200
  %248 = vmatprep.subr.bf16.mxu0 0
  %249 = vmatpush1.bf16.msra.mxu0 %v201
  %250 = vmatprep.mubr.bf16.mxu0 %v64
  %251 = vmatmul.mubr.bf16.gmra.mrb[0].mxu0 %v115
  %v252 = vpop.f32.mrb[0].mxu0
  %v253 = vadd.f32 %v120, %v252
  %v254 = vpop.f32.mrb[0].mxu0
  %v255 = vpop.f32.mrb[0].mxu0
  %v256 = vadd.f32 %v120, %v255
  %v257 = vpop.f32.mrb[0].mxu0
  %258 = vdwg.mxu0
  %v259 = vmax.f32 %v253, 0.0
  %v260 = vmax.f32 %v256, 0.0
  %s261 = scalar_lea.vmem %s3, 128
  %v262 = vld [vmem:[%s261] sm:$0xf]
  %v263 = vld [vmem:[%s261 + $0x4] sm:$0xf]
  %v264 = vld [vmem:[%s261 + $0x8] sm:$0xf]
  %v265 = vld [vmem:[%s261 + $0xc] sm:$0xf]
  %v266 = vld [vmem:[%s261 + $0x10] sm:$0xf]
  %v267 = vld [vmem:[%s261 + $0x14] sm:$0xf]
  %v268 = vld [vmem:[%s261 + $0x18] sm:$0xf]
  %v269 = vld [vmem:[%s261 + $0x1c] sm:$0xf]
  %v270 = vld [vmem:[%s261 + $0x20] sm:$0xf]
  %v271 = vld [vmem:[%s261 + $0x24] sm:$0xf]
  %v272 = vld [vmem:[%s261 + $0x28] sm:$0xf]
  %v273 = vld [vmem:[%s261 + $0x2c] sm:$0xf]
  %v274 = vld [vmem:[%s261 + $0x30] sm:$0xf]
  %v275 = vld [vmem:[%s261 + $0x34] sm:$0xf]
  %v276 = vld [vmem:[%s261 + $0x38] sm:$0xf]
  %v277 = vld [vmem:[%s261 + $0x3c] sm:$0xf]
  %v278 = vld [vmem:[%s261 + $0x40] sm:$0xf]
  %v279 = vld [vmem:[%s261 + $0x44] sm:$0xf]
  %v280 = vld [vmem:[%s261 + $0x48] sm:$0xf]
  %v281 = vld [vmem:[%s261 + $0x4c] sm:$0xf]
  %v282 = vld [vmem:[%s261 + $0x50] sm:$0xf]
  %v283 = vld [vmem:[%s261 + $0x54] sm:$0xf]
  %v284 = vld [vmem:[%s261 + $0x58] sm:$0xf]
  %v285 = vld [vmem:[%s261 + $0x5c] sm:$0xf]
  %v286 = vld [vmem:[%s261 + $0x60] sm:$0xf]
  %v287 = vld [vmem:[%s261 + $0x64] sm:$0xf]
  %v288 = vld [vmem:[%s261 + $0x68] sm:$0xf]
  %v289 = vld [vmem:[%s261 + $0x6c] sm:$0xf]
  %v290 = vld [vmem:[%s261 + $0x70] sm:$0xf]
  %v291 = vld [vmem:[%s261 + $0x74] sm:$0xf]
  %v292 = vld [vmem:[%s261 + $0x78] sm:$0xf]
  %v293 = vld [vmem:[%s261 + $0x7c] sm:$0xf]
  %s294 = scalar_lea.vmem %s4, 1
  %v295 = vld [vmem:[%s294] sm:$0x1]
  %v296 = vpack.c.bf16 %v260, %v259
  %297 = vmatprep.subr.bf16.mxu0 0
  %298 = vmatpush1.bf16.msra.mxu0 %v296
  %299 = vmatprep.subr.bf16.mxu0 0
  %300 = vmatpush1.bf16.msra.mxu0 0
  %301 = vmatprep.subr.bf16.mxu0 0
  %302 = vmatpush1.bf16.msra.mxu0 0
  %303 = vmatprep.subr.bf16.mxu0 0
  %304 = vmatpush1.bf16.msra.mxu0 0
  %305 = vmatprep.subr.bf16.mxu0 0
  %306 = vmatpush1.bf16.msra.mxu0 0
  %307 = vmatprep.subr.bf16.mxu0 0
  %308 = vmatpush1.bf16.msra.mxu0 0
  %309 = vmatprep.subr.bf16.mxu0 0
  %310 = vmatpush1.bf16.msra.mxu0 0
  %311 = vmatprep.subr.bf16.mxu0 0
  %312 = vmatpush1.bf16.msra.mxu0 0
  %313 = vmatprep.subr.bf16.mxu0 0
  %314 = vmatpush1.bf16.msra.mxu0 0
  %315 = vmatprep.subr.bf16.mxu0 0
  %316 = vmatpush1.bf16.msra.mxu0 0
  %317 = vmatprep.subr.bf16.mxu0 0
  %318 = vmatpush1.bf16.msra.mxu0 0
  %319 = vmatprep.subr.bf16.mxu0 0
  %320 = vmatpush1.bf16.msra.mxu0 0
  %321 = vmatprep.subr.bf16.mxu0 0
  %322 = vmatpush1.bf16.msra.mxu0 0
  %323 = vmatprep.subr.bf16.mxu0 0
  %324 = vmatpush1.bf16.msra.mxu0 0
  %325 = vmatprep.subr.bf16.mxu0 0
  %326 = vmatpush1.bf16.msra.mxu0 0
  %327 = vmatprep.subr.bf16.mxu0 0
  %328 = vmatpush1.bf16.msra.mxu0 0
  %329 = vmatprep.mubr.bf16.mxu0 0
  %330 = vmatmul.mubr.bf16.gmra.mrb[0].mxu0 %v72
  %v331 = vpop.f32.mrb[0].mxu0
  %v332 = vadd.f32 0.0, %v331
  %v333 = vpop.f32.mrb[0].mxu0
  %v334 = vpop.f32.mrb[0].mxu0
  %v335 = vadd.f32 0.0, %v334
  %v336 = vpop.f32.mrb[0].mxu0
  %337 = vdwg.mxu0
  %v338 = vpack.c.bf16 %v335, %v332
  %v340 = vlaneseq
  %v341 = vshrl.u32 %v340, 7
  %v342 = vsub.s32 0, %v341
  %v343 = vrot.slane %v295, %v342
  %v377 = vunpack.c.l.b16 %v262
  %v378 = vunpack.c.l.b16 %v263
  %v379 = vunpack.c.l.b16 %v264
  %v380 = vunpack.c.l.b16 %v265
  %v381 = vunpack.c.l.b16 %v266
  %v382 = vunpack.c.l.b16 %v267
  %v383 = vunpack.c.l.b16 %v268
  %v384 = vunpack.c.l.b16 %v269
  %v385 = vunpack.c.l.b16 %v270
  %v386 = vunpack.c.l.b16 %v271
  %v387 = vunpack.c.l.b16 %v272
  %v388 = vunpack.c.l.b16 %v273
  %v389 = vunpack.c.l.b16 %v274
  %v390 = vunpack.c.l.b16 %v275
  %v391 = vunpack.c.l.b16 %v276
  %v392 = vunpack.c.l.b16 %v277
  %v393 = vunpack.c.l.b16 %v278
  %v394 = vunpack.c.l.b16 %v279
  %v395 = vunpack.c.l.b16 %v280
  %v396 = vunpack.c.l.b16 %v281
  %v397 = vunpack.c.l.b16 %v282
  %v398 = vunpack.c.l.b16 %v283
  %v399 = vunpack.c.l.b16 %v284
  %v400 = vunpack.c.l.b16 %v285
  %v401 = vunpack.c.l.b16 %v286
  %v402 = vunpack.c.l.b16 %v287
  %v403 = vunpack.c.l.b16 %v288
  %v404 = vunpack.c.l.b16 %v289
  %v405 = vunpack.c.l.b16 %v290
  %v406 = vunpack.c.l.b16 %v291
  %v407 = vunpack.c.l.b16 %v292
  %v408 = vunpack.c.l.b16 %v293
  %v409 = vpack.c.b16 %v378, %v377
  %v410 = vpack.c.b16 %v380, %v379
  %v411 = vpack.c.b16 %v382, %v381
  %v412 = vpack.c.b16 %v384, %v383
  %v413 = vpack.c.b16 %v386, %v385
  %v414 = vpack.c.b16 %v388, %v387
  %v415 = vpack.c.b16 %v390, %v389
  %v416 = vpack.c.b16 %v392, %v391
  %v417 = vpack.c.b16 %v394, %v393
  %v418 = vpack.c.b16 %v396, %v395
  %v419 = vpack.c.b16 %v398, %v397
  %v420 = vpack.c.b16 %v400, %v399
  %v421 = vpack.c.b16 %v402, %v401
  %v422 = vpack.c.b16 %v404, %v403
  %v423 = vpack.c.b16 %v406, %v405
  %v424 = vpack.c.b16 %v408, %v407
  %441 = vmatprep.subr.bf16.mxu0 0
  %442 = vmatpush1.bf16.msra.mxu0 %v409
  %443 = vmatprep.subr.bf16.mxu0 0
  %444 = vmatpush1.bf16.msra.mxu0 %v410
  %445 = vmatprep.subr.bf16.mxu0 0
  %446 = vmatpush1.bf16.msra.mxu0 %v411
  %447 = vmatprep.subr.bf16.mxu0 0
  %448 = vmatpush1.bf16.msra.mxu0 %v412
  %449 = vmatprep.subr.bf16.mxu0 0
  %450 = vmatpush1.bf16.msra.mxu0 %v413
  %451 = vmatprep.subr.bf16.mxu0 0
  %452 = vmatpush1.bf16.msra.mxu0 %v414
  %453 = vmatprep.subr.bf16.mxu0 0
  %454 = vmatpush1.bf16.msra.mxu0 %v415
  %455 = vmatprep.subr.bf16.mxu0 0
  %456 = vmatpush1.bf16.msra.mxu0 %v416
  %457 = vmatprep.subr.bf16.mxu0 0
  %458 = vmatpush1.bf16.msra.mxu0 %v417
  %459 = vmatprep.subr.bf16.mxu0 0
  %460 = vmatpush1.bf16.msra.mxu0 %v418
  %461 = vmatprep.subr.bf16.mxu0 0
  %462 = vmatpush1.bf16.msra.mxu0 %v419
  %463 = vmatprep.subr.bf16.mxu0 0
  %464 = vmatpush1.bf16.msra.mxu0 %v420
  %465 = vmatprep.subr.bf16.mxu0 0
  %466 = vmatpush1.bf16.msra.mxu0 %v421
  %467 = vmatprep.subr.bf16.mxu0 0
  %468 = vmatpush1.bf16.msra.mxu0 %v422
  %469 = vmatprep.subr.bf16.mxu0 0
  %470 = vmatpush1.bf16.msra.mxu0 %v423
  %471 = vmatprep.subr.bf16.mxu0 0
  %472 = vmatpush1.bf16.msra.mxu0 %v424
  %473 = vmatprep.mubr.bf16.mxu0 %v296
  %474 = vmatmul.mubr.bf16.gmra.mrb[0].mxu0 %v338
  %v475 = vpop.f32.mrb[0].mxu0
  %v476 = vadd.f32 %v343, %v475
  %v477 = vpop.f32.mrb[0].mxu0
  %v478 = vpop.f32.mrb[0].mxu0
  %v479 = vadd.f32 %v343, %v478
  %v480 = vpop.f32.mrb[0].mxu0
  %481 = vdwg.mxu0
  %v482 = vmax.f32 %v476, 0.0
  %v483 = vmax.f32 %v479, 0.0
  %s484 = scalar_lea.vmem %s3, 256
  %v485 = vld [vmem:[%s484] sm:$0xf]
  %v486 = vld [vmem:[%s484 + $0x4] sm:$0xf]
  %v487 = vld [vmem:[%s484 + $0x8] sm:$0xf]
  %v488 = vld [vmem:[%s484 + $0xc] sm:$0xf]
  %v489 = vld [vmem:[%s484 + $0x10] sm:$0xf]
  %v490 = vld [vmem:[%s484 + $0x14] sm:$0xf]
  %v491 = vld [vmem:[%s484 + $0x18] sm:$0xf]
  %v492 = vld [vmem:[%s484 + $0x1c] sm:$0xf]
  %v493 = vld [vmem:[%s484 + $0x20] sm:$0xf]
  %v494 = vld [vmem:[%s484 + $0x24] sm:$0xf]
  %v495 = vld [vmem:[%s484 + $0x28] sm:$0xf]
  %v496 = vld [vmem:[%s484 + $0x2c] sm:$0xf]
  %v497 = vld [vmem:[%s484 + $0x30] sm:$0xf]
  %v498 = vld [vmem:[%s484 + $0x34] sm:$0xf]
  %v499 = vld [vmem:[%s484 + $0x38] sm:$0xf]
  %v500 = vld [vmem:[%s484 + $0x3c] sm:$0xf]
  %v501 = vld [vmem:[%s484 + $0x40] sm:$0xf]
  %v502 = vld [vmem:[%s484 + $0x44] sm:$0xf]
  %v503 = vld [vmem:[%s484 + $0x48] sm:$0xf]
  %v504 = vld [vmem:[%s484 + $0x4c] sm:$0xf]
  %v505 = vld [vmem:[%s484 + $0x50] sm:$0xf]
  %v506 = vld [vmem:[%s484 + $0x54] sm:$0xf]
  %v507 = vld [vmem:[%s484 + $0x58] sm:$0xf]
  %v508 = vld [vmem:[%s484 + $0x5c] sm:$0xf]
  %v509 = vld [vmem:[%s484 + $0x60] sm:$0xf]
  %v510 = vld [vmem:[%s484 + $0x64] sm:$0xf]
  %v511 = vld [vmem:[%s484 + $0x68] sm:$0xf]
  %v512 = vld [vmem:[%s484 + $0x6c] sm:$0xf]
  %v513 = vld [vmem:[%s484 + $0x70] sm:$0xf]
  %v514 = vld [vmem:[%s484 + $0x74] sm:$0xf]
  %v515 = vld [vmem:[%s484 + $0x78] sm:$0xf]
  %v516 = vld [vmem:[%s484 + $0x7c] sm:$0xf]
  %s517 = scalar_lea.vmem %s4, 2
  %v518 = vld [vmem:[%s517] sm:$0x1]
  %v519 = vpack.c.bf16 %v483, %v482
  %520 = vmatprep.subr.bf16.mxu0 0
  %521 = vmatpush1.bf16.msra.mxu0 %v519
  %522 = vmatprep.subr.bf16.mxu0 0
  %523 = vmatpush1.bf16.msra.mxu0 0
  %524 = vmatprep.subr.bf16.mxu0 0
  %525 = vmatpush1.bf16.msra.mxu0 0
  %526 = vmatprep.subr.bf16.mxu0 0
  %527 = vmatpush1.bf16.msra.mxu0 0
  %528 = vmatprep.subr.bf16.mxu0 0
  %529 = vmatpush1.bf16.msra.mxu0 0
  %530 = vmatprep.subr.bf16.mxu0 0
  %531 = vmatpush1.bf16.msra.mxu0 0
  %532 = vmatprep.subr.bf16.mxu0 0
  %533 = vmatpush1.bf16.msra.mxu0 0
  %534 = vmatprep.subr.bf16.mxu0 0
  %535 = vmatpush1.bf16.msra.mxu0 0
  %536 = vmatprep.subr.bf16.mxu0 0
  %537 = vmatpush1.bf16.msra.mxu0 0
  %538 = vmatprep.subr.bf16.mxu0 0
  %539 = vmatpush1.bf16.msra.mxu0 0
  %540 = vmatprep.subr.bf16.mxu0 0
  %541 = vmatpush1.bf16.msra.mxu0 0
  %542 = vmatprep.subr.bf16.mxu0 0
  %543 = vmatpush1.bf16.msra.mxu0 0
  %544 = vmatprep.subr.bf16.mxu0 0
  %545 = vmatpush1.bf16.msra.mxu0 0
  %546 = vmatprep.subr.bf16.mxu0 0
  %547 = vmatpush1.bf16.msra.mxu0 0
  %548 = vmatprep.subr.bf16.mxu0 0
  %549 = vmatpush1.bf16.msra.mxu0 0
  %550 = vmatprep.subr.bf16.mxu0 0
  %551 = vmatpush1.bf16.msra.mxu0 0
  %552 = vmatprep.mubr.bf16.mxu0 0
  %553 = vmatmul.mubr.bf16.gmra.mrb[0].mxu0 %v72
  %v554 = vpop.f32.mrb[0].mxu0
  %v555 = vadd.f32 0.0, %v554
  %v556 = vpop.f32.mrb[0].mxu0
  %v557 = vpop.f32.mrb[0].mxu0
  %v558 = vadd.f32 0.0, %v557
  %v559 = vpop.f32.mrb[0].mxu0
  %560 = vdwg.mxu0
  %v561 = vpack.c.bf16 %v558, %v555
  %v563 = vlaneseq
  %v564 = vshrl.u32 %v563, 7
  %v565 = vsub.s32 0, %v564
  %v566 = vrot.slane %v518, %v565
  %v600 = vunpack.c.l.b16 %v485
  %v601 = vunpack.c.l.b16 %v486
  %v602 = vunpack.c.l.b16 %v487
  %v603 = vunpack.c.l.b16 %v488
  %v604 = vunpack.c.l.b16 %v489
  %v605 = vunpack.c.l.b16 %v490
  %v606 = vunpack.c.l.b16 %v491
  %v607 = vunpack.c.l.b16 %v492
  %v608 = vunpack.c.l.b16 %v493
  %v609 = vunpack.c.l.b16 %v494
  %v610 = vunpack.c.l.b16 %v495
  %v611 = vunpack.c.l.b16 %v496
  %v612 = vunpack.c.l.b16 %v497
  %v613 = vunpack.c.l.b16 %v498
  %v614 = vunpack.c.l.b16 %v499
  %v615 = vunpack.c.l.b16 %v500
  %v616 = vunpack.c.l.b16 %v501
  %v617 = vunpack.c.l.b16 %v502
  %v618 = vunpack.c.l.b16 %v503
  %v619 = vunpack.c.l.b16 %v504
  %v620 = vunpack.c.l.b16 %v505
  %v621 = vunpack.c.l.b16 %v506
  %v622 = vunpack.c.l.b16 %v507
  %v623 = vunpack.c.l.b16 %v508
  %v624 = vunpack.c.l.b16 %v509
  %v625 = vunpack.c.l.b16 %v510
  %v626 = vunpack.c.l.b16 %v511
  %v627 = vunpack.c.l.b16 %v512
  %v628 = vunpack.c.l.b16 %v513
  %v629 = vunpack.c.l.b16 %v514
  %v630 = vunpack.c.l.b16 %v515
  %v631 = vunpack.c.l.b16 %v516
  %v632 = vpack.c.b16 %v601, %v600
  %v633 = vpack.c.b16 %v603, %v602
  %v634 = vpack.c.b16 %v605, %v604
  %v635 = vpack.c.b16 %v607, %v606
  %v636 = vpack.c.b16 %v609, %v608
  %v637 = vpack.c.b16 %v611, %v610
  %v638 = vpack.c.b16 %v613, %v612
  %v639 = vpack.c.b16 %v615, %v614
  %v640 = vpack.c.b16 %v617, %v616
  %v641 = vpack.c.b16 %v619, %v618
  %v642 = vpack.c.b16 %v621, %v620
  %v643 = vpack.c.b16 %v623, %v622
  %v644 = vpack.c.b16 %v625, %v624
  %v645 = vpack.c.b16 %v627, %v626
  %v646 = vpack.c.b16 %v629, %v628
  %v647 = vpack.c.b16 %v631, %v630
  %664 = vmatprep.subr.bf16.mxu0 0
  %665 = vmatpush1.bf16.msra.mxu0 %v632
  %666 = vmatprep.subr.bf16.mxu0 0
  %667 = vmatpush1.bf16.msra.mxu0 %v633
  %668 = vmatprep.subr.bf16.mxu0 0
  %669 = vmatpush1.bf16.msra.mxu0 %v634
  %670 = vmatprep.subr.bf16.mxu0 0
  %671 = vmatpush1.bf16.msra.mxu0 %v635
  %672 = vmatprep.subr.bf16.mxu0 0
  %673 = vmatpush1.bf16.msra.mxu0 %v636
  %674 = vmatprep.subr.bf16.mxu0 0
  %675 = vmatpush1.bf16.msra.mxu0 %v637
  %676 = vmatprep.subr.bf16.mxu0 0
  %677 = vmatpush1.bf16.msra.mxu0 %v638
  %678 = vmatprep.subr.bf16.mxu0 0
  %679 = vmatpush1.bf16.msra.mxu0 %v639
  %680 = vmatprep.subr.bf16.mxu0 0
  %681 = vmatpush1.bf16.msra.mxu0 %v640
  %682 = vmatprep.subr.bf16.mxu0 0
  %683 = vmatpush1.bf16.msra.mxu0 %v641
  %684 = vmatprep.subr.bf16.mxu0 0
  %685 = vmatpush1.bf16.msra.mxu0 %v642
  %686 = vmatprep.subr.bf16.mxu0 0
  %687 = vmatpush1.bf16.msra.mxu0 %v643
  %688 = vmatprep.subr.bf16.mxu0 0
  %689 = vmatpush1.bf16.msra.mxu0 %v644
  %690 = vmatprep.subr.bf16.mxu0 0
  %691 = vmatpush1.bf16.msra.mxu0 %v645
  %692 = vmatprep.subr.bf16.mxu0 0
  %693 = vmatpush1.bf16.msra.mxu0 %v646
  %694 = vmatprep.subr.bf16.mxu0 0
  %695 = vmatpush1.bf16.msra.mxu0 %v647
  %696 = vmatprep.mubr.bf16.mxu0 %v519
  %697 = vmatmul.mubr.bf16.gmra.mrb[0].mxu0 %v561
  %v698 = vpop.f32.mrb[0].mxu0
  %v699 = vadd.f32 %v566, %v698
  %v700 = vpop.f32.mrb[0].mxu0
  %v701 = vpop.f32.mrb[0].mxu0
  %v702 = vadd.f32 %v566, %v701
  %v703 = vpop.f32.mrb[0].mxu0
  %704 = vdwg.mxu0
  %v705 = vmax.f32 %v699, 0.0
  %v706 = vmax.f32 %v702, 0.0
  %s707 = scalar_lea.vmem %s3, 384
  %v708 = vld [vmem:[%s707] sm:$0xf]
  %v709 = vld [vmem:[%s707 + $0x4] sm:$0xf]
  %v710 = vld [vmem:[%s707 + $0x8] sm:$0xf]
  %v711 = vld [vmem:[%s707 + $0xc] sm:$0xf]
  %v712 = vld [vmem:[%s707 + $0x10] sm:$0xf]
  %v713 = vld [vmem:[%s707 + $0x14] sm:$0xf]
  %v714 = vld [vmem:[%s707 + $0x18] sm:$0xf]
  %v715 = vld [vmem:[%s707 + $0x1c] sm:$0xf]
  %v716 = vld [vmem:[%s707 + $0x20] sm:$0xf]
  %v717 = vld [vmem:[%s707 + $0x24] sm:$0xf]
  %v718 = vld [vmem:[%s707 + $0x28] sm:$0xf]
  %v719 = vld [vmem:[%s707 + $0x2c] sm:$0xf]
  %v720 = vld [vmem:[%s707 + $0x30] sm:$0xf]
  %v721 = vld [vmem:[%s707 + $0x34] sm:$0xf]
  %v722 = vld [vmem:[%s707 + $0x38] sm:$0xf]
  %v723 = vld [vmem:[%s707 + $0x3c] sm:$0xf]
  %v724 = vld [vmem:[%s707 + $0x40] sm:$0xf]
  %v725 = vld [vmem:[%s707 + $0x44] sm:$0xf]
  %v726 = vld [vmem:[%s707 + $0x48] sm:$0xf]
  %v727 = vld [vmem:[%s707 + $0x4c] sm:$0xf]
  %v728 = vld [vmem:[%s707 + $0x50] sm:$0xf]
  %v729 = vld [vmem:[%s707 + $0x54] sm:$0xf]
  %v730 = vld [vmem:[%s707 + $0x58] sm:$0xf]
  %v731 = vld [vmem:[%s707 + $0x5c] sm:$0xf]
  %v732 = vld [vmem:[%s707 + $0x60] sm:$0xf]
  %v733 = vld [vmem:[%s707 + $0x64] sm:$0xf]
  %v734 = vld [vmem:[%s707 + $0x68] sm:$0xf]
  %v735 = vld [vmem:[%s707 + $0x6c] sm:$0xf]
  %v736 = vld [vmem:[%s707 + $0x70] sm:$0xf]
  %v737 = vld [vmem:[%s707 + $0x74] sm:$0xf]
  %v738 = vld [vmem:[%s707 + $0x78] sm:$0xf]
  %v739 = vld [vmem:[%s707 + $0x7c] sm:$0xf]
  %s740 = scalar_lea.vmem %s4, 3
  %v741 = vld [vmem:[%s740] sm:$0x1]
  %v742 = vpack.c.bf16 %v706, %v705
  %743 = vmatprep.subr.bf16.mxu0 0
  %744 = vmatpush1.bf16.msra.mxu0 %v742
  %745 = vmatprep.subr.bf16.mxu0 0
  %746 = vmatpush1.bf16.msra.mxu0 0
  %747 = vmatprep.subr.bf16.mxu0 0
  %748 = vmatpush1.bf16.msra.mxu0 0
  %749 = vmatprep.subr.bf16.mxu0 0
  %750 = vmatpush1.bf16.msra.mxu0 0
  %751 = vmatprep.subr.bf16.mxu0 0
  %752 = vmatpush1.bf16.msra.mxu0 0
  %753 = vmatprep.subr.bf16.mxu0 0
  %754 = vmatpush1.bf16.msra.mxu0 0
  %755 = vmatprep.subr.bf16.mxu0 0
  %756 = vmatpush1.bf16.msra.mxu0 0
  %757 = vmatprep.subr.bf16.mxu0 0
  %758 = vmatpush1.bf16.msra.mxu0 0
  %759 = vmatprep.subr.bf16.mxu0 0
  %760 = vmatpush1.bf16.msra.mxu0 0
  %761 = vmatprep.subr.bf16.mxu0 0
  %762 = vmatpush1.bf16.msra.mxu0 0
  %763 = vmatprep.subr.bf16.mxu0 0
  %764 = vmatpush1.bf16.msra.mxu0 0
  %765 = vmatprep.subr.bf16.mxu0 0
  %766 = vmatpush1.bf16.msra.mxu0 0
  %767 = vmatprep.subr.bf16.mxu0 0
  %768 = vmatpush1.bf16.msra.mxu0 0
  %769 = vmatprep.subr.bf16.mxu0 0
  %770 = vmatpush1.bf16.msra.mxu0 0
  %771 = vmatprep.subr.bf16.mxu0 0
  %772 = vmatpush1.bf16.msra.mxu0 0
  %773 = vmatprep.subr.bf16.mxu0 0
  %774 = vmatpush1.bf16.msra.mxu0 0
  %775 = vmatprep.mubr.bf16.mxu0 0
  %776 = vmatmul.mubr.bf16.gmra.mrb[0].mxu0 %v72
  %v777 = vpop.f32.mrb[0].mxu0
  %v778 = vadd.f32 0.0, %v777
  %v779 = vpop.f32.mrb[0].mxu0
  %v780 = vpop.f32.mrb[0].mxu0
  %v781 = vadd.f32 0.0, %v780
  %v782 = vpop.f32.mrb[0].mxu0
  %783 = vdwg.mxu0
  %v784 = vpack.c.bf16 %v781, %v778
  %v786 = vlaneseq
  %v787 = vshrl.u32 %v786, 7
  %v788 = vsub.s32 0, %v787
  %v789 = vrot.slane %v741, %v788
  %v823 = vunpack.c.l.b16 %v708
  %v824 = vunpack.c.l.b16 %v709
  %v825 = vunpack.c.l.b16 %v710
  %v826 = vunpack.c.l.b16 %v711
  %v827 = vunpack.c.l.b16 %v712
  %v828 = vunpack.c.l.b16 %v713
  %v829 = vunpack.c.l.b16 %v714
  %v830 = vunpack.c.l.b16 %v715
  %v831 = vunpack.c.l.b16 %v716
  %v832 = vunpack.c.l.b16 %v717
  %v833 = vunpack.c.l.b16 %v718
  %v834 = vunpack.c.l.b16 %v719
  %v835 = vunpack.c.l.b16 %v720
  %v836 = vunpack.c.l.b16 %v721
  %v837 = vunpack.c.l.b16 %v722
  %v838 = vunpack.c.l.b16 %v723
  %v839 = vunpack.c.l.b16 %v724
  %v840 = vunpack.c.l.b16 %v725
  %v841 = vunpack.c.l.b16 %v726
  %v842 = vunpack.c.l.b16 %v727
  %v843 = vunpack.c.l.b16 %v728
  %v844 = vunpack.c.l.b16 %v729
  %v845 = vunpack.c.l.b16 %v730
  %v846 = vunpack.c.l.b16 %v731
  %v847 = vunpack.c.l.b16 %v732
  %v848 = vunpack.c.l.b16 %v733
  %v849 = vunpack.c.l.b16 %v734
  %v850 = vunpack.c.l.b16 %v735
  %v851 = vunpack.c.l.b16 %v736
  %v852 = vunpack.c.l.b16 %v737
  %v853 = vunpack.c.l.b16 %v738
  %v854 = vunpack.c.l.b16 %v739
  %v855 = vpack.c.b16 %v824, %v823
  %v856 = vpack.c.b16 %v826, %v825
  %v857 = vpack.c.b16 %v828, %v827
  %v858 = vpack.c.b16 %v830, %v829
  %v859 = vpack.c.b16 %v832, %v831
  %v860 = vpack.c.b16 %v834, %v833
  %v861 = vpack.c.b16 %v836, %v835
  %v862 = vpack.c.b16 %v838, %v837
  %v863 = vpack.c.b16 %v840, %v839
  %v864 = vpack.c.b16 %v842, %v841
  %v865 = vpack.c.b16 %v844, %v843
  %v866 = vpack.c.b16 %v846, %v845
  %v867 = vpack.c.b16 %v848, %v847
  %v868 = vpack.c.b16 %v850, %v849
  %v869 = vpack.c.b16 %v852, %v851
  %v870 = vpack.c.b16 %v854, %v853
  %887 = vmatprep.subr.bf16.mxu0 0
  %888 = vmatpush1.bf16.msra.mxu0 %v855
  %889 = vmatprep.subr.bf16.mxu0 0
  %890 = vmatpush1.bf16.msra.mxu0 %v856
  %891 = vmatprep.subr.bf16.mxu0 0
  %892 = vmatpush1.bf16.msra.mxu0 %v857
  %893 = vmatprep.subr.bf16.mxu0 0
  %894 = vmatpush1.bf16.msra.mxu0 %v858
  %895 = vmatprep.subr.bf16.mxu0 0
  %896 = vmatpush1.bf16.msra.mxu0 %v859
  %897 = vmatprep.subr.bf16.mxu0 0
  %898 = vmatpush1.bf16.msra.mxu0 %v860
  %899 = vmatprep.subr.bf16.mxu0 0
  %900 = vmatpush1.bf16.msra.mxu0 %v861
  %901 = vmatprep.subr.bf16.mxu0 0
  %902 = vmatpush1.bf16.msra.mxu0 %v862
  %903 = vmatprep.subr.bf16.mxu0 0
  %904 = vmatpush1.bf16.msra.mxu0 %v863
  %905 = vmatprep.subr.bf16.mxu0 0
  %906 = vmatpush1.bf16.msra.mxu0 %v864
  %907 = vmatprep.subr.bf16.mxu0 0
  %908 = vmatpush1.bf16.msra.mxu0 %v865
  %909 = vmatprep.subr.bf16.mxu0 0
  %910 = vmatpush1.bf16.msra.mxu0 %v866
  %911 = vmatprep.subr.bf16.mxu0 0
  %912 = vmatpush1.bf16.msra.mxu0 %v867
  %913 = vmatprep.subr.bf16.mxu0 0
  %914 = vmatpush1.bf16.msra.mxu0 %v868
  %915 = vmatprep.subr.bf16.mxu0 0
  %916 = vmatpush1.bf16.msra.mxu0 %v869
  %917 = vmatprep.subr.bf16.mxu0 0
  %918 = vmatpush1.bf16.msra.mxu0 %v870
  %919 = vmatprep.mubr.bf16.mxu0 %v742
  %920 = vmatmul.mubr.bf16.gmra.mrb[0].mxu0 %v784
  %v921 = vpop.f32.mrb[0].mxu0
  %v922 = vadd.f32 %v789, %v921
  %v923 = vpop.f32.mrb[0].mxu0
  %v924 = vpop.f32.mrb[0].mxu0
  %v925 = vadd.f32 %v789, %v924
  %v926 = vpop.f32.mrb[0].mxu0
  %927 = vdwg.mxu0
  %v928 = vmax.f32 %v922, 0.0
  %v929 = vmax.f32 %v925, 0.0
  %s930 = scalar_lea.vmem %s3, 512
  %v931 = vld [vmem:[%s930] sm:$0xf]
  %v932 = vld [vmem:[%s930 + $0x4] sm:$0xf]
  %v933 = vld [vmem:[%s930 + $0x8] sm:$0xf]
  %v934 = vld [vmem:[%s930 + $0xc] sm:$0xf]
  %v935 = vld [vmem:[%s930 + $0x10] sm:$0xf]
  %v936 = vld [vmem:[%s930 + $0x14] sm:$0xf]
  %v937 = vld [vmem:[%s930 + $0x18] sm:$0xf]
  %v938 = vld [vmem:[%s930 + $0x1c] sm:$0xf]
  %v939 = vld [vmem:[%s930 + $0x20] sm:$0xf]
  %v940 = vld [vmem:[%s930 + $0x24] sm:$0xf]
  %v941 = vld [vmem:[%s930 + $0x28] sm:$0xf]
  %v942 = vld [vmem:[%s930 + $0x2c] sm:$0xf]
  %v943 = vld [vmem:[%s930 + $0x30] sm:$0xf]
  %v944 = vld [vmem:[%s930 + $0x34] sm:$0xf]
  %v945 = vld [vmem:[%s930 + $0x38] sm:$0xf]
  %v946 = vld [vmem:[%s930 + $0x3c] sm:$0xf]
  %v947 = vld [vmem:[%s930 + $0x40] sm:$0xf]
  %v948 = vld [vmem:[%s930 + $0x44] sm:$0xf]
  %v949 = vld [vmem:[%s930 + $0x48] sm:$0xf]
  %v950 = vld [vmem:[%s930 + $0x4c] sm:$0xf]
  %v951 = vld [vmem:[%s930 + $0x50] sm:$0xf]
  %v952 = vld [vmem:[%s930 + $0x54] sm:$0xf]
  %v953 = vld [vmem:[%s930 + $0x58] sm:$0xf]
  %v954 = vld [vmem:[%s930 + $0x5c] sm:$0xf]
  %v955 = vld [vmem:[%s930 + $0x60] sm:$0xf]
  %v956 = vld [vmem:[%s930 + $0x64] sm:$0xf]
  %v957 = vld [vmem:[%s930 + $0x68] sm:$0xf]
  %v958 = vld [vmem:[%s930 + $0x6c] sm:$0xf]
  %v959 = vld [vmem:[%s930 + $0x70] sm:$0xf]
  %v960 = vld [vmem:[%s930 + $0x74] sm:$0xf]
  %v961 = vld [vmem:[%s930 + $0x78] sm:$0xf]
  %v962 = vld [vmem:[%s930 + $0x7c] sm:$0xf]
  %s963 = scalar_lea.vmem %s4, 4
  %v964 = vld [vmem:[%s963] sm:$0x1]
  %v965 = vpack.c.bf16 %v929, %v928
  %966 = vmatprep.subr.bf16.mxu0 0
  %967 = vmatpush1.bf16.msra.mxu0 %v965
  %968 = vmatprep.subr.bf16.mxu0 0
  %969 = vmatpush1.bf16.msra.mxu0 0
  %970 = vmatprep.subr.bf16.mxu0 0
  %971 = vmatpush1.bf16.msra.mxu0 0
  %972 = vmatprep.subr.bf16.mxu0 0
  %973 = vmatpush1.bf16.msra.mxu0 0
  %974 = vmatprep.subr.bf16.mxu0 0
  %975 = vmatpush1.bf16.msra.mxu0 0
  %976 = vmatprep.subr.bf16.mxu0 0
  %977 = vmatpush1.bf16.msra.mxu0 0
  %978 = vmatprep.subr.bf16.mxu0 0
  %979 = vmatpush1.bf16.msra.mxu0 0
  %980 = vmatprep.subr.bf16.mxu0 0
  %981 = vmatpush1.bf16.msra.mxu0 0
  %982 = vmatprep.subr.bf16.mxu0 0
  %983 = vmatpush1.bf16.msra.mxu0 0
  %984 = vmatprep.subr.bf16.mxu0 0
  %985 = vmatpush1.bf16.msra.mxu0 0
  %986 = vmatprep.subr.bf16.mxu0 0
  %987 = vmatpush1.bf16.msra.mxu0 0
  %988 = vmatprep.subr.bf16.mxu0 0
  %989 = vmatpush1.bf16.msra.mxu0 0
  %990 = vmatprep.subr.bf16.mxu0 0
  %991 = vmatpush1.bf16.msra.mxu0 0
  %992 = vmatprep.subr.bf16.mxu0 0
  %993 = vmatpush1.bf16.msra.mxu0 0
  %994 = vmatprep.subr.bf16.mxu0 0
  %995 = vmatpush1.bf16.msra.mxu0 0
  %996 = vmatprep.subr.bf16.mxu0 0
  %997 = vmatpush1.bf16.msra.mxu0 0
  %998 = vmatprep.mubr.bf16.mxu0 0
  %999 = vmatmul.mubr.bf16.gmra.mrb[0].mxu0 %v72
  %v1000 = vpop.f32.mrb[0].mxu0
  %v1001 = vadd.f32 0.0, %v1000
  %v1002 = vpop.f32.mrb[0].mxu0
  %v1003 = vpop.f32.mrb[0].mxu0
  %v1004 = vadd.f32 0.0, %v1003
  %v1005 = vpop.f32.mrb[0].mxu0
  %1006 = vdwg.mxu0
  %v1007 = vpack.c.bf16 %v1004, %v1001
  %v1009 = vlaneseq
  %v1010 = vshrl.u32 %v1009, 7
  %v1011 = vsub.s32 0, %v1010
  %v1012 = vrot.slane %v964, %v1011
  %v1046 = vunpack.c.l.b16 %v931
  %v1047 = vunpack.c.l.b16 %v932
  %v1048 = vunpack.c.l.b16 %v933
  %v1049 = vunpack.c.l.b16 %v934
  %v1050 = vunpack.c.l.b16 %v935
  %v1051 = vunpack.c.l.b16 %v936
  %v1052 = vunpack.c.l.b16 %v937
  %v1053 = vunpack.c.l.b16 %v938
  %v1054 = vunpack.c.l.b16 %v939
  %v1055 = vunpack.c.l.b16 %v940
  %v1056 = vunpack.c.l.b16 %v941
  %v1057 = vunpack.c.l.b16 %v942
  %v1058 = vunpack.c.l.b16 %v943
  %v1059 = vunpack.c.l.b16 %v944
  %v1060 = vunpack.c.l.b16 %v945
  %v1061 = vunpack.c.l.b16 %v946
  %v1062 = vunpack.c.l.b16 %v947
  %v1063 = vunpack.c.l.b16 %v948
  %v1064 = vunpack.c.l.b16 %v949
  %v1065 = vunpack.c.l.b16 %v950
  %v1066 = vunpack.c.l.b16 %v951
  %v1067 = vunpack.c.l.b16 %v952
  %v1068 = vunpack.c.l.b16 %v953
  %v1069 = vunpack.c.l.b16 %v954
  %v1070 = vunpack.c.l.b16 %v955
  %v1071 = vunpack.c.l.b16 %v956
  %v1072 = vunpack.c.l.b16 %v957
  %v1073 = vunpack.c.l.b16 %v958
  %v1074 = vunpack.c.l.b16 %v959
  %v1075 = vunpack.c.l.b16 %v960
  %v1076 = vunpack.c.l.b16 %v961
  %v1077 = vunpack.c.l.b16 %v962
  %v1078 = vpack.c.b16 %v1047, %v1046
  %v1079 = vpack.c.b16 %v1049, %v1048
  %v1080 = vpack.c.b16 %v1051, %v1050
  %v1081 = vpack.c.b16 %v1053, %v1052
  %v1082 = vpack.c.b16 %v1055, %v1054
  %v1083 = vpack.c.b16 %v1057, %v1056
  %v1084 = vpack.c.b16 %v1059, %v1058
  %v1085 = vpack.c.b16 %v1061, %v1060
  %v1086 = vpack.c.b16 %v1063, %v1062
  %v1087 = vpack.c.b16 %v1065, %v1064
  %v1088 = vpack.c.b16 %v1067, %v1066
  %v1089 = vpack.c.b16 %v1069, %v1068
  %v1090 = vpack.c.b16 %v1071, %v1070
  %v1091 = vpack.c.b16 %v1073, %v1072
  %v1092 = vpack.c.b16 %v1075, %v1074
  %v1093 = vpack.c.b16 %v1077, %v1076
  %1110 = vmatprep.subr.bf16.mxu0 0
  %1111 = vmatpush1.bf16.msra.mxu0 %v1078
  %1112 = vmatprep.subr.bf16.mxu0 0
  %1113 = vmatpush1.bf16.msra.mxu0 %v1079
  %1114 = vmatprep.subr.bf16.mxu0 0
  %1115 = vmatpush1.bf16.msra.mxu0 %v1080
  %1116 = vmatprep.subr.bf16.mxu0 0
  %1117 = vmatpush1.bf16.msra.mxu0 %v1081
  %1118 = vmatprep.subr.bf16.mxu0 0
  %1119 = vmatpush1.bf16.msra.mxu0 %v1082
  %1120 = vmatprep.subr.bf16.mxu0 0
  %1121 = vmatpush1.bf16.msra.mxu0 %v1083
  %1122 = vmatprep.subr.bf16.mxu0 0
  %1123 = vmatpush1.bf16.msra.mxu0 %v1084
  %1124 = vmatprep.subr.bf16.mxu0 0
  %1125 = vmatpush1.bf16.msra.mxu0 %v1085
  %1126 = vmatprep.subr.bf16.mxu0 0
  %1127 = vmatpush1.bf16.msra.mxu0 %v1086
  %1128 = vmatprep.subr.bf16.mxu0 0
  %1129 = vmatpush1.bf16.msra.mxu0 %v1087
  %1130 = vmatprep.subr.bf16.mxu0 0
  %1131 = vmatpush1.bf16.msra.mxu0 %v1088
  %1132 = vmatprep.subr.bf16.mxu0 0
  %1133 = vmatpush1.bf16.msra.mxu0 %v1089
  %1134 = vmatprep.subr.bf16.mxu0 0
  %1135 = vmatpush1.bf16.msra.mxu0 %v1090
  %1136 = vmatprep.subr.bf16.mxu0 0
  %1137 = vmatpush1.bf16.msra.mxu0 %v1091
  %1138 = vmatprep.subr.bf16.mxu0 0
  %1139 = vmatpush1.bf16.msra.mxu0 %v1092
  %1140 = vmatprep.subr.bf16.mxu0 0
  %1141 = vmatpush1.bf16.msra.mxu0 %v1093
  %1142 = vmatprep.mubr.bf16.mxu0 %v965
  %1143 = vmatmul.mubr.bf16.gmra.mrb[0].mxu0 %v1007
  %v1144 = vpop.f32.mrb[0].mxu0
  %v1145 = vadd.f32 %v1012, %v1144
  %v1146 = vpop.f32.mrb[0].mxu0
  %v1147 = vpop.f32.mrb[0].mxu0
  %v1148 = vadd.f32 %v1012, %v1147
  %v1149 = vpop.f32.mrb[0].mxu0
  %1150 = vdwg.mxu0
  %v1151 = vmax.f32 %v1145, 0.0
  %v1152 = vmax.f32 %v1148, 0.0
  %v1153 = vld [vmem:[%s2] sm:$0xff]
  %v1155 = vsel %vm70, %v1153, 0
  %1157 = vmatprep.subr.mxu0 0.0
  %1158 = vmatpush1.msra.mxu0 %v1151
  %1159 = vmatprep.subr.mxu0 0.0
  %1160 = vmatpush1.msra.mxu0 %v1152
  %1161 = vmatprep.subr.mxu0 0.0
  %1162 = vmatpush1.msra.mxu0 0.0
  %1163 = vmatprep.subr.mxu0 0.0
  %1164 = vmatpush1.msra.mxu0 0.0
  %1165 = vmatprep.subr.mxu0 0.0
  %1166 = vmatpush1.msra.mxu0 0.0
  %1167 = vmatprep.subr.mxu0 0.0
  %1168 = vmatpush1.msra.mxu0 0.0
  %1169 = vmatprep.subr.mxu0 0.0
  %1170 = vmatpush1.msra.mxu0 0.0
  %1171 = vmatprep.subr.mxu0 0.0
  %1172 = vmatpush1.msra.mxu0 0.0
  %1173 = vmatprep.subr.mxu0 0.0
  %1174 = vmatpush1.msra.mxu0 0.0
  %1175 = vmatprep.subr.mxu0 0.0
  %1176 = vmatpush1.msra.mxu0 0.0
  %1177 = vmatprep.subr.mxu0 0.0
  %1178 = vmatpush1.msra.mxu0 0.0
  %1179 = vmatprep.subr.mxu0 0.0
  %1180 = vmatpush1.msra.mxu0 0.0
  %1181 = vmatprep.subr.mxu0 0.0
  %1182 = vmatpush1.msra.mxu0 0.0
  %1183 = vmatprep.subr.mxu0 0.0
  %1184 = vmatpush1.msra.mxu0 0.0
  %1185 = vmatprep.subr.mxu0 0.0
  %1186 = vmatpush1.msra.mxu0 0.0
  %1187 = vmatprep.subr.mxu0 0.0
  %1188 = vmatpush1.msra.mxu0 0.0
  %1189 = vmatprep.subr.mxu0 0.0
  %1190 = vmatpush1.msra.mxu0 0.0
  %1191 = vmatprep.subr.mxu0 0.0
  %1192 = vmatpush1.msra.mxu0 0.0
  %1193 = vmatprep.subr.mxu0 0.0
  %1194 = vmatpush1.msra.mxu0 0.0
  %1195 = vmatprep.subr.mxu0 0.0
  %1196 = vmatpush1.msra.mxu0 0.0
  %1197 = vmatprep.subr.mxu0 0.0
  %1198 = vmatpush1.msra.mxu0 0.0
  %1199 = vmatprep.subr.mxu0 0.0
  %1200 = vmatpush1.msra.mxu0 0.0
  %1201 = vmatprep.subr.mxu0 0.0
  %1202 = vmatpush1.msra.mxu0 0.0
  %1203 = vmatprep.subr.mxu0 0.0
  %1204 = vmatpush1.msra.mxu0 0.0
  %1205 = vmatprep.subr.mxu0 0.0
  %1206 = vmatpush1.msra.mxu0 0.0
  %1207 = vmatprep.subr.mxu0 0.0
  %1208 = vmatpush1.msra.mxu0 0.0
  %1209 = vmatprep.subr.mxu0 0.0
  %1210 = vmatpush1.msra.mxu0 0.0
  %1211 = vmatprep.subr.mxu0 0.0
  %1212 = vmatpush1.msra.mxu0 0.0
  %1213 = vmatprep.subr.mxu0 0.0
  %1214 = vmatpush1.msra.mxu0 0.0
  %1215 = vmatprep.subr.mxu0 0.0
  %1216 = vmatpush1.msra.mxu0 0.0
  %1217 = vmatprep.subr.mxu0 0.0
  %1218 = vmatpush1.msra.mxu0 0.0
  %1219 = vmatprep.subr.mxu0 0.0
  %1220 = vmatpush1.msra.mxu0 0.0
  %1221 = vmatprep.mubr.f32.mxu0 0.0
  %1222 = vmatmul.mubr.f32.gmra.mrb[0].mxu0 %v1155
  %v1223 = vpop.f32.mrb[0].mxu0
  %v1224 = vadd.f32 0.0, %v1223
  %v1225 = vpop.f32.mrb[0].mxu0
  %1226 = vdwg.mxu0
  %v1227 = vld [vmem:[%s5] sm:$0xf]
  %v1228 = vld [vmem:[%s5 + $0x4] sm:$0xf]
  %v1229 = vld [vmem:[%s5 + $0x8] sm:$0xf]
  %v1230 = vld [vmem:[%s5 + $0xc] sm:$0xf]
  %v1231 = vld [vmem:[%s5 + $0x10] sm:$0xf]
  %v1232 = vld [vmem:[%s5 + $0x14] sm:$0xf]
  %v1233 = vld [vmem:[%s5 + $0x18] sm:$0xf]
  %v1234 = vld [vmem:[%s5 + $0x1c] sm:$0xf]
  %v1235 = vld [vmem:[%s5 + $0x20] sm:$0xf]
  %v1236 = vld [vmem:[%s5 + $0x24] sm:$0xf]
  %v1237 = vld [vmem:[%s5 + $0x28] sm:$0xf]
  %v1238 = vld [vmem:[%s5 + $0x2c] sm:$0xf]
  %v1239 = vld [vmem:[%s5 + $0x30] sm:$0xf]
  %v1240 = vld [vmem:[%s5 + $0x34] sm:$0xf]
  %v1241 = vld [vmem:[%s5 + $0x38] sm:$0xf]
  %v1242 = vld [vmem:[%s5 + $0x3c] sm:$0xf]
  %v1243 = vld [vmem:[%s6] sm:$0x1]
  %v1244 = vpack.c.bf16 %v1224, %v1224
  %v1246 = vlaneseq
  %v1247 = vshrl.u32 %v1246, 7
  %v1248 = vsub.s32 0, %v1247
  %v1249 = vrot.slane %v1243, %v1248
  %v1267 = vunpack.c.l.b16 %v1227
  %v1268 = vunpack.c.l.b16 %v1228
  %v1269 = vunpack.c.l.b16 %v1229
  %v1270 = vunpack.c.l.b16 %v1230
  %v1271 = vunpack.c.l.b16 %v1231
  %v1272 = vunpack.c.l.b16 %v1232
  %v1273 = vunpack.c.l.b16 %v1233
  %v1274 = vunpack.c.l.b16 %v1234
  %v1275 = vunpack.c.l.b16 %v1235
  %v1276 = vunpack.c.l.b16 %v1236
  %v1277 = vunpack.c.l.b16 %v1237
  %v1278 = vunpack.c.l.b16 %v1238
  %v1279 = vunpack.c.l.b16 %v1239
  %v1280 = vunpack.c.l.b16 %v1240
  %v1281 = vunpack.c.l.b16 %v1241
  %v1282 = vunpack.c.l.b16 %v1242
  %v1283 = vpack.c.b16 %v1268, %v1267
  %v1284 = vpack.c.b16 %v1270, %v1269
  %v1285 = vpack.c.b16 %v1272, %v1271
  %v1286 = vpack.c.b16 %v1274, %v1273
  %v1287 = vpack.c.b16 %v1276, %v1275
  %v1288 = vpack.c.b16 %v1278, %v1277
  %v1289 = vpack.c.b16 %v1280, %v1279
  %v1290 = vpack.c.b16 %v1282, %v1281
  %1299 = vmatprep.subr.bf16.mxu0 0
  %1300 = vmatpush1.bf16.msra.mxu0 %v1283
  %1301 = vmatprep.subr.bf16.mxu0 0
  %1302 = vmatpush1.bf16.msra.mxu0 %v1284
  %1303 = vmatprep.subr.bf16.mxu0 0
  %1304 = vmatpush1.bf16.msra.mxu0 %v1285
  %1305 = vmatprep.subr.bf16.mxu0 0
  %1306 = vmatpush1.bf16.msra.mxu0 %v1286
  %1307 = vmatprep.subr.bf16.mxu0 0
  %1308 = vmatpush1.bf16.msra.mxu0 %v1287
  %1309 = vmatprep.subr.bf16.mxu0 0
  %1310 = vmatpush1.bf16.msra.mxu0 %v1288
  %1311 = vmatprep.subr.bf16.mxu0 0
  %1312 = vmatpush1.bf16.msra.mxu0 %v1289
  %1313 = vmatprep.subr.bf16.mxu0 0
  %1314 = vmatpush1.bf16.msra.mxu0 %v1290
  %1315 = vmatprep.subr.bf16.mxu0 0
  %1316 = vmatpush1.bf16.msra.mxu0 0
  %1317 = vmatprep.subr.bf16.mxu0 0
  %1318 = vmatpush1.bf16.msra.mxu0 0
  %1319 = vmatprep.subr.bf16.mxu0 0
  %1320 = vmatpush1.bf16.msra.mxu0 0
  %1321 = vmatprep.subr.bf16.mxu0 0
  %1322 = vmatpush1.bf16.msra.mxu0 0
  %1323 = vmatprep.subr.bf16.mxu0 0
  %1324 = vmatpush1.bf16.msra.mxu0 0
  %1325 = vmatprep.subr.bf16.mxu0 0
  %1326 = vmatpush1.bf16.msra.mxu0 0
  %1327 = vmatprep.subr.bf16.mxu0 0
  %1328 = vmatpush1.bf16.msra.mxu0 0
  %1329 = vmatprep.subr.bf16.mxu0 0
  %1330 = vmatpush1.bf16.msra.mxu0 0
  %1331 = vmatprep.mubr.bf16.mxu0 0
  %1332 = vmatmul.mubr.bf16.gmra.mrb[0].mxu0 %v1244
  %v1333 = vpop.f32.mrb[0].mxu0
  %v1334 = vadd.f32 %v1249, %v1333
  %v1335 = vpop.f32.mrb[0].mxu0
  %v1336 = vpop.f32.mrb[0].mxu0
  %v1337 = vpop.f32.mrb[0].mxu0
  %1338 = vdwg.mxu0
  %v1339 = vmax.f32 %v1334, 0.0
  %s1340 = scalar_lea.vmem %s5, 64
  %v1341 = vld [vmem:[%s1340] sm:$0xf]
  %v1342 = vld [vmem:[%s1340 + $0x4] sm:$0xf]
  %v1343 = vld [vmem:[%s1340 + $0x8] sm:$0xf]
  %v1344 = vld [vmem:[%s1340 + $0xc] sm:$0xf]
  %v1345 = vld [vmem:[%s1340 + $0x10] sm:$0xf]
  %v1346 = vld [vmem:[%s1340 + $0x14] sm:$0xf]
  %v1347 = vld [vmem:[%s1340 + $0x18] sm:$0xf]
  %v1348 = vld [vmem:[%s1340 + $0x1c] sm:$0xf]
  %v1349 = vld [vmem:[%s1340 + $0x20] sm:$0xf]
  %v1350 = vld [vmem:[%s1340 + $0x24] sm:$0xf]
  %v1351 = vld [vmem:[%s1340 + $0x28] sm:$0xf]
  %v1352 = vld [vmem:[%s1340 + $0x2c] sm:$0xf]
  %v1353 = vld [vmem:[%s1340 + $0x30] sm:$0xf]
  %v1354 = vld [vmem:[%s1340 + $0x34] sm:$0xf]
  %v1355 = vld [vmem:[%s1340 + $0x38] sm:$0xf]
  %v1356 = vld [vmem:[%s1340 + $0x3c] sm:$0xf]
  %s1357 = scalar_lea.vmem %s6, 1
  %v1358 = vld [vmem:[%s1357] sm:$0x1]
  %v1359 = vpack.c.bf16 %v1339, %v1339
  %v1361 = vlaneseq
  %v1362 = vshrl.u32 %v1361, 7
  %v1363 = vsub.s32 0, %v1362
  %v1364 = vrot.slane %v1358, %v1363
  %v1382 = vunpack.c.l.b16 %v1341
  %v1383 = vunpack.c.l.b16 %v1342
  %v1384 = vunpack.c.l.b16 %v1343
  %v1385 = vunpack.c.l.b16 %v1344
  %v1386 = vunpack.c.l.b16 %v1345
  %v1387 = vunpack.c.l.b16 %v1346
  %v1388 = vunpack.c.l.b16 %v1347
  %v1389 = vunpack.c.l.b16 %v1348
  %v1390 = vunpack.c.l.b16 %v1349
  %v1391 = vunpack.c.l.b16 %v1350
  %v1392 = vunpack.c.l.b16 %v1351
  %v1393 = vunpack.c.l.b16 %v1352
  %v1394 = vunpack.c.l.b16 %v1353
  %v1395 = vunpack.c.l.b16 %v1354
  %v1396 = vunpack.c.l.b16 %v1355
  %v1397 = vunpack.c.l.b16 %v1356
  %v1398 = vpack.c.b16 %v1383, %v1382
  %v1399 = vpack.c.b16 %v1385, %v1384
  %v1400 = vpack.c.b16 %v1387, %v1386
  %v1401 = vpack.c.b16 %v1389, %v1388
  %v1402 = vpack.c.b16 %v1391, %v1390
  %v1403 = vpack.c.b16 %v1393, %v1392
  %v1404 = vpack.c.b16 %v1395, %v1394
  %v1405 = vpack.c.b16 %v1397, %v1396
  %1414 = vmatprep.subr.bf16.mxu0 0
  %1415 = vmatpush1.bf16.msra.mxu0 %v1398
  %1416 = vmatprep.subr.bf16.mxu0 0
  %1417 = vmatpush1.bf16.msra.mxu0 %v1399
  %1418 = vmatprep.subr.bf16.mxu0 0
  %1419 = vmatpush1.bf16.msra.mxu0 %v1400
  %1420 = vmatprep.subr.bf16.mxu0 0
  %1421 = vmatpush1.bf16.msra.mxu0 %v1401
  %1422 = vmatprep.subr.bf16.mxu0 0
  %1423 = vmatpush1.bf16.msra.mxu0 %v1402
  %1424 = vmatprep.subr.bf16.mxu0 0
  %1425 = vmatpush1.bf16.msra.mxu0 %v1403
  %1426 = vmatprep.subr.bf16.mxu0 0
  %1427 = vmatpush1.bf16.msra.mxu0 %v1404
  %1428 = vmatprep.subr.bf16.mxu0 0
  %1429 = vmatpush1.bf16.msra.mxu0 %v1405
  %1430 = vmatprep.subr.bf16.mxu0 0
  %1431 = vmatpush1.bf16.msra.mxu0 0
  %1432 = vmatprep.subr.bf16.mxu0 0
  %1433 = vmatpush1.bf16.msra.mxu0 0
  %1434 = vmatprep.subr.bf16.mxu0 0
  %1435 = vmatpush1.bf16.msra.mxu0 0
  %1436 = vmatprep.subr.bf16.mxu0 0
  %1437 = vmatpush1.bf16.msra.mxu0 0
  %1438 = vmatprep.subr.bf16.mxu0 0
  %1439 = vmatpush1.bf16.msra.mxu0 0
  %1440 = vmatprep.subr.bf16.mxu0 0
  %1441 = vmatpush1.bf16.msra.mxu0 0
  %1442 = vmatprep.subr.bf16.mxu0 0
  %1443 = vmatpush1.bf16.msra.mxu0 0
  %1444 = vmatprep.subr.bf16.mxu0 0
  %1445 = vmatpush1.bf16.msra.mxu0 0
  %1446 = vmatprep.mubr.bf16.mxu0 0
  %1447 = vmatmul.mubr.bf16.gmra.mrb[0].mxu0 %v1359
  %v1448 = vpop.f32.mrb[0].mxu0
  %v1449 = vadd.f32 %v1364, %v1448
  %v1450 = vpop.f32.mrb[0].mxu0
  %v1451 = vpop.f32.mrb[0].mxu0
  %v1452 = vpop.f32.mrb[0].mxu0
  %1453 = vdwg.mxu0
  %v1454 = vmax.f32 %v1449, 0.0
  %s1455 = scalar_lea.vmem %s5, 128
  %v1456 = vld [vmem:[%s1455] sm:$0xf]
  %v1457 = vld [vmem:[%s1455 + $0x4] sm:$0xf]
  %v1458 = vld [vmem:[%s1455 + $0x8] sm:$0xf]
  %v1459 = vld [vmem:[%s1455 + $0xc] sm:$0xf]
  %v1460 = vld [vmem:[%s1455 + $0x10] sm:$0xf]
  %v1461 = vld [vmem:[%s1455 + $0x14] sm:$0xf]
  %v1462 = vld [vmem:[%s1455 + $0x18] sm:$0xf]
  %v1463 = vld [vmem:[%s1455 + $0x1c] sm:$0xf]
  %v1464 = vld [vmem:[%s1455 + $0x20] sm:$0xf]
  %v1465 = vld [vmem:[%s1455 + $0x24] sm:$0xf]
  %v1466 = vld [vmem:[%s1455 + $0x28] sm:$0xf]
  %v1467 = vld [vmem:[%s1455 + $0x2c] sm:$0xf]
  %v1468 = vld [vmem:[%s1455 + $0x30] sm:$0xf]
  %v1469 = vld [vmem:[%s1455 + $0x34] sm:$0xf]
  %v1470 = vld [vmem:[%s1455 + $0x38] sm:$0xf]
  %v1471 = vld [vmem:[%s1455 + $0x3c] sm:$0xf]
  %s1472 = scalar_lea.vmem %s6, 2
  %v1473 = vld [vmem:[%s1472] sm:$0x1]
  %v1474 = vpack.c.bf16 %v1454, %v1454
  %v1476 = vlaneseq
  %v1477 = vshrl.u32 %v1476, 7
  %v1478 = vsub.s32 0, %v1477
  %v1479 = vrot.slane %v1473, %v1478
  %v1497 = vunpack.c.l.b16 %v1456
  %v1498 = vunpack.c.l.b16 %v1457
  %v1499 = vunpack.c.l.b16 %v1458
  %v1500 = vunpack.c.l.b16 %v1459
  %v1501 = vunpack.c.l.b16 %v1460
  %v1502 = vunpack.c.l.b16 %v1461
  %v1503 = vunpack.c.l.b16 %v1462
  %v1504 = vunpack.c.l.b16 %v1463
  %v1505 = vunpack.c.l.b16 %v1464
  %v1506 = vunpack.c.l.b16 %v1465
  %v1507 = vunpack.c.l.b16 %v1466
  %v1508 = vunpack.c.l.b16 %v1467
  %v1509 = vunpack.c.l.b16 %v1468
  %v1510 = vunpack.c.l.b16 %v1469
  %v1511 = vunpack.c.l.b16 %v1470
  %v1512 = vunpack.c.l.b16 %v1471
  %v1513 = vpack.c.b16 %v1498, %v1497
  %v1514 = vpack.c.b16 %v1500, %v1499
  %v1515 = vpack.c.b16 %v1502, %v1501
  %v1516 = vpack.c.b16 %v1504, %v1503
  %v1517 = vpack.c.b16 %v1506, %v1505
  %v1518 = vpack.c.b16 %v1508, %v1507
  %v1519 = vpack.c.b16 %v1510, %v1509
  %v1520 = vpack.c.b16 %v1512, %v1511
  %1529 = vmatprep.subr.bf16.mxu0 0
  %1530 = vmatpush1.bf16.msra.mxu0 %v1513
  %1531 = vmatprep.subr.bf16.mxu0 0
  %1532 = vmatpush1.bf16.msra.mxu0 %v1514
  %1533 = vmatprep.subr.bf16.mxu0 0
  %1534 = vmatpush1.bf16.msra.mxu0 %v1515
  %1535 = vmatprep.subr.bf16.mxu0 0
  %1536 = vmatpush1.bf16.msra.mxu0 %v1516
  %1537 = vmatprep.subr.bf16.mxu0 0
  %1538 = vmatpush1.bf16.msra.mxu0 %v1517
  %1539 = vmatprep.subr.bf16.mxu0 0
  %1540 = vmatpush1.bf16.msra.mxu0 %v1518
  %1541 = vmatprep.subr.bf16.mxu0 0
  %1542 = vmatpush1.bf16.msra.mxu0 %v1519
  %1543 = vmatprep.subr.bf16.mxu0 0
  %1544 = vmatpush1.bf16.msra.mxu0 %v1520
  %1545 = vmatprep.subr.bf16.mxu0 0
  %1546 = vmatpush1.bf16.msra.mxu0 0
  %1547 = vmatprep.subr.bf16.mxu0 0
  %1548 = vmatpush1.bf16.msra.mxu0 0
  %1549 = vmatprep.subr.bf16.mxu0 0
  %1550 = vmatpush1.bf16.msra.mxu0 0
  %1551 = vmatprep.subr.bf16.mxu0 0
  %1552 = vmatpush1.bf16.msra.mxu0 0
  %1553 = vmatprep.subr.bf16.mxu0 0
  %1554 = vmatpush1.bf16.msra.mxu0 0
  %1555 = vmatprep.subr.bf16.mxu0 0
  %1556 = vmatpush1.bf16.msra.mxu0 0
  %1557 = vmatprep.subr.bf16.mxu0 0
  %1558 = vmatpush1.bf16.msra.mxu0 0
  %1559 = vmatprep.subr.bf16.mxu0 0
  %1560 = vmatpush1.bf16.msra.mxu0 0
  %1561 = vmatprep.mubr.bf16.mxu0 0
  %1562 = vmatmul.mubr.bf16.gmra.mrb[0].mxu0 %v1474
  %v1563 = vpop.f32.mrb[0].mxu0
  %v1564 = vadd.f32 %v1479, %v1563
  %v1565 = vpop.f32.mrb[0].mxu0
  %v1566 = vpop.f32.mrb[0].mxu0
  %v1567 = vpop.f32.mrb[0].mxu0
  %1568 = vdwg.mxu0
  %1569 = vst [vmem:[%s7] sm:$0xff] %v1564
  // Predicated region
  $region30: #{gnn_forward.1} parent=0 // pred_check
    _
  $region31: #{gnn_forward.1} parent=0 // pred_check_branch
    %1571 = sbr.rel (0) target = $region33
  $region32: #{gnn_forward.1} parent=0 // pred_region
    _
  $region33: #{gnn_forward.1} parent=0 // pred_fallthru
    _
  // Predicated region
  $region34: #{gnn_forward.1} parent=0 // pred_check
    _
  $region35: #{gnn_forward.1} parent=0 // pred_check_branch
    %1573 = sbr.rel (0) target = $region37
  $region36: #{gnn_forward.1} parent=0 // pred_region
    _
  $region37: #{gnn_forward.1} parent=0 // pred_fallthru
    _

</llo_original>
